<compile_context>
chip_gen: v6e
topology: v6e:2x2x1
jax: 0.10.0
libtpu: 0.0.40
codegen_flags: <defaults>
</compile_context>

<pallas_src>
import jax
import jax.numpy as jnp
from jax import lax
from jax.experimental import pallas as pl
from jax.experimental.pallas import tpu as pltpu


# Contract the last dim of both operands: x(., D) . W(D_out, D) -> x @ W^T
# (no in-kernel transposes -> no XLU vxpose copies).
_CONTRACT_LAST = (((1,), (1,)), ((), ()))


def _kv_proj_kernel(m_ref, wkv_ref, bkv_ref, k_ref, v_ref):
    """Fused key|value projection for one tile of memory rows."""
    D = k_ref.shape[-1]
    mem = m_ref[...]                                            # (tm, D)
    kv = lax.dot_general(mem, wkv_ref[...], _CONTRACT_LAST,     # (tm, 2D)
                         preferred_element_type=jnp.float32) + bkv_ref[...]
    k_ref[...] = kv[:, :D].astype(k_ref.dtype)
    v_ref[...] = kv[:, D:].astype(v_ref.dtype)


def _attn_kernel(q_ref, wq_ref, bq_ref, k_ref, v_ref, o_ref):
    """Per-query-tile attention against VMEM-resident K / V."""
    # Q projection for this tile (f32 accumulation, f32 bias add).
    Q = lax.dot_general(q_ref[...], wq_ref[...], _CONTRACT_LAST,
                        preferred_element_type=jnp.float32) + bq_ref[...]
    # Scores = Q @ K^T without materializing a transposed K.
    s = lax.dot_general(Q.astype(k_ref.dtype), k_ref[...], _CONTRACT_LAST,
                        preferred_element_type=jnp.float32)     # (tq, M)
    # Numerically stable softmax over the memory axis (no 1/sqrt(D) scale,
    # matching the PyTorch module).  Exact reciprocal on the EUP (free slot).
    s_max = jnp.max(s, axis=-1, keepdims=True)
    p = jnp.exp(s - s_max)
    p = p * pl.reciprocal(jnp.sum(p, axis=-1, keepdims=True), approx=False)
    # Context = P @ V.
    ctx = jnp.dot(p.astype(v_ref.dtype), v_ref[...],
                  preferred_element_type=jnp.float32)
    o_ref[...] = ctx.astype(o_ref.dtype)


def memory_attention(query, memory_features, params, *,
                     block_q=256, block_m=512,
                     compute_dtype=jnp.bfloat16,
                     single_buffer_resident=True):
    """Pallas MemoryAttention forward.

    query: (N, D), memory_features: (M, D).
    compute_dtype: MXU operand dtype (f32 accumulation everywhere); default
    bf16.  Pass jnp.float32 for the exact f32 path.
    """
    N, D = query.shape
    M, _ = memory_features.shape
    out_dtype = query.dtype

    if compute_dtype is None:
        compute_dtype = query.dtype

    wq = params["wq"].astype(compute_dtype)
    # Fused K|V weight: one (2D)-wide matmul fills the 256-wide MXU output on
    # v6e / v7x (and is still a small win on v5e's 128-wide MXU).
    wkv = jnp.concatenate([params["wk"], params["wv"]], axis=0).astype(compute_dtype)
    # Biases stay f32: added onto the f32 matmul accumulators.
    bq = params["bq"].astype(jnp.float32)
    bkv = jnp.concatenate([params["bk"], params["bv"]], axis=1).astype(jnp.float32)

    query = query.astype(compute_dtype)
    memory_features = memory_features.astype(compute_dtype)

    kv_dtype = compute_dtype
    isz = jnp.dtype(kv_dtype).itemsize
    osz = jnp.dtype(out_dtype).itemsize

    # Constant-index ("resident") inputs: single-buffer them so K/V/weights
    # occupy 1x instead of the default 2x VMEM.
    resident_kwargs = (
        dict(pipeline_mode=pl.Buffered(1)) if single_buffer_resident else {})

    def resident(shape):
        return pl.BlockSpec(shape, lambda i: (0, 0), **resident_kwargs)

    # Per-TensorCore VMEM budget: v7x 64 MiB, v5e/v6e 128 MiB; leave headroom
    # for Mosaic internal scratch.
    try:
        vmem_cap = int(pltpu.get_tpu_info().vmem_capacity_bytes)
    except Exception:
        vmem_cap = 64 * 1024 * 1024        # conservative (v7x) default
    vmem_budget = vmem_cap - 8 * 1024 * 1024

    # ---------- Pass 1: fused K / V projection (hoisted, done once) ----------
    tm = min(block_m, M)
    kv_flops = 2 * M * D * (2 * D)
    kv_bytes = isz * (M * D + 2 * D * D + 2 * M * D) + 4 * (2 * D)
    k_mat, v_mat = pl.pallas_call(
        _kv_proj_kernel,
        out_shape=(jax.ShapeDtypeStruct((M, D), kv_dtype),
                   jax.ShapeDtypeStruct((M, D), kv_dtype)),
        grid=(pl.cdiv(M, tm),),
        in_specs=[
            pl.BlockSpec((tm, D), lambda i: (i, 0)),   # memory tile (pipelined)
            resident((2 * D, D)),                      # wk|wv fused (resident)
            resident((1, 2 * D)),                      # bk|bv fused (resident)
        ],
        out_specs=(pl.BlockSpec((tm, D), lambda i: (i, 0)),
                   pl.BlockSpec((tm, D), lambda i: (i, 0))),
        compiler_params=pltpu.CompilerParams(
            dimension_semantics=("parallel",)),
        cost_estimate=pl.CostEstimate(
            flops=kv_flops, transcendentals=0, bytes_accessed=kv_bytes),
    )(memory_features, wkv, bkv)

    # ---------- Pass 2: attention, gridded over query tiles ----------
    # TODO(synk): on single-TensorCore chips (v5e/v6e) fold pass 1 into this
    # call (K/V scratch + pl.when(program_id == 0)) to skip the k_mat/v_mat
    # HBM round trip; kept two passes so the "parallel" axis stays safe on
    # v7x megacore.
    tq = min(block_q, N)
    # Keep >= 2 grid steps so the "parallel" query axis can shard across both
    # v7x TensorCores; larger tiles amortize the ~0.35 us per-step overhead.
    if pl.cdiv(N, tq) < 2 and N > 8:
        tq = max(8, ((-(-N // 2)) + 7) // 8 * 8)

    res_buf = 1 if single_buffer_resident else 2
    vmem_est = (
        2 * tq * D * isz                       # query tile, double-buffered
        + 2 * tq * D * osz                     # output tile, double-buffered
        + res_buf * (D * D * isz + D * 4)      # wq + bq (f32 bias)
        + res_buf * 2 * M * D * isz            # resident K, V
        + 4 * (tq * M + 2 * tq * D))           # f32 scores + Q / ctx temps
    if vmem_est > vmem_budget:
        # TODO(synk): flash-style second "arbitrary" KV grid axis (online
        # softmax with m/l/acc scratch) once K/V residency outgrows VMEM.
        raise NotImplementedError(
            f"K/V residency estimate {vmem_est} B exceeds VMEM budget "
            f"{vmem_budget} B; flash-style KV tiling not implemented.")
    vmem_limit = int(min(vmem_budget, max(32 * 1024 * 1024, 2 * vmem_est)))

    attn_flops = 2 * N * D * D + 2 * 2 * N * M * D
    attn_bytes = isz * (N * D + D * D + 2 * M * D) + 4 * D + osz * N * D

    return pl.pallas_call(
        _attn_kernel,
        out_shape=jax.ShapeDtypeStruct((N, D), out_dtype),
        grid=(pl.cdiv(N, tq),),
        in_specs=[
            pl.BlockSpec((tq, D), lambda i: (i, 0)),   # query tile (pipelined)
            resident((D, D)),                          # wq (resident)
            resident((1, D)),                          # bq (resident)
            resident((M, D)),                          # K  (resident)
            resident((M, D)),                          # V  (resident)
        ],
        out_specs=pl.BlockSpec((tq, D), lambda i: (i, 0)),
        compiler_params=pltpu.CompilerParams(
            dimension_semantics=("parallel",),
            vmem_limit_bytes=vmem_limit),
        cost_estimate=pl.CostEstimate(
            flops=attn_flops, transcendentals=N * M, bytes_accessed=attn_bytes),
    )(query, wq, bq, k_mat, v_mat)


def init_params(key, feature_dim, dtype=jnp.float32):
    """Deterministic synthetic parameters (PyTorch nn.Linear shapes & init)."""
    ks = jax.random.split(key, 6)
    scale = 1.0 / jnp.sqrt(feature_dim)

    def lin(kw, kb):
        w = jax.random.uniform(kw, (feature_dim, feature_dim), dtype, -scale, scale)
        b = jax.random.uniform(kb, (1, feature_dim), dtype, -scale, scale)
        return w, b

    wq, bq = lin(ks[0], ks[1])
    wk, bk = lin(ks[2], ks[3])
    wv, bv = lin(ks[4], ks[5])
    return {"wq": wq, "bq": bq, "wk": wk, "bk": bk, "wv": wv, "bv": bv}


def memory_attention_ref(query, memory_features, params):
    """Pure-JAX reference (mirrors the PyTorch module exactly)."""
    Q = query @ params["wq"].T + params["bq"]
    K = memory_features @ params["wk"].T + params["bk"]
    V = memory_features @ params["wv"].T + params["bv"]
    attn = jax.nn.softmax(Q @ K.T, axis=-1)
    return attn @ V


if __name__ == "__main__":
    key = jax.random.PRNGKey(0)
    k_q, k_m, k_p = jax.random.split(key, 3)

    # Small but hardware-friendly shapes: D lane-dense (128); N spans >= 2
    # query tiles so the grid / pipelining path is exercised.
    N, M, D = 256, 384, 128
    query = jax.random.normal(k_q, (N, D), jnp.float32)
    memory_features = jax.random.normal(k_m, (M, D), jnp.float32)
    params = init_params(k_p, D)

    ref = memory_attention_ref(query, memory_features, params)

    def run(**kw):
        return jax.block_until_ready(
            memory_attention(query, memory_features, params, **kw))

    # Default bf16 MXU path (f32 accumulation).
    try:
        out = run()
        single_buffer = True
    except Exception:
        # Fallback if Buffered(1) pipeline_mode is rejected by this jax build.
        out = run(single_buffer_resident=False)
        single_buffer = False

    assert out.shape == (N, D) and out.dtype == query.dtype
    err = jnp.abs(out - ref)
    assert float(jnp.max(err)) < 1.2e-1, float(jnp.max(err))
    assert float(jnp.mean(err)) < 1e-2, float(jnp.mean(err))

    # Exact f32 path: tight semantic check against the reference.
    out_f32 = run(compute_dtype=jnp.float32, single_buffer_resident=single_buffer)
    assert jnp.allclose(out_f32, ref, atol=2e-3, rtol=2e-3), \
        float(jnp.max(jnp.abs(out_f32 - ref)))

    print("KERNEL_OK")
</pallas_src>

<mosaic_0001>
module attributes {stable_mosaic.version = 11 : i64} {
  func.func @_kv_proj_kernel(%arg0: i32, %arg1: memref<384x128xbf16, #tpu.memory_space<vmem>>, %arg2: memref<256x128xbf16, #tpu.memory_space<vmem>>, %arg3: memref<1x256xf32, #tpu.memory_space<vmem>>, %arg4: memref<384x128xbf16, #tpu.memory_space<vmem>>, %arg5: memref<384x128xbf16, #tpu.memory_space<vmem>>) attributes {dimension_semantics = [#tpu.dimension_semantics<parallel>], iteration_bounds = array<i64: 1>, scalar_prefetch = 0 : i64, scratch_operands = 0 : i64, tpu.core_type = #tpu.core_type<tc>, window_params = [{transform_indices = @transform_0, window_bounds = array<i64: 384, 128>}, {pipeline_mode = #tpu.pipeline_mode<synchronous>, transform_indices = @transform_1, window_bounds = array<i64: 256, 128>}, {pipeline_mode = #tpu.pipeline_mode<synchronous>, transform_indices = @transform_2, window_bounds = array<i64: 1, 256>}, {transform_indices = @transform_3, window_bounds = array<i64: 384, 128>}, {transform_indices = @transform_4, window_bounds = array<i64: 384, 128>}]} {
    %c0 = arith.constant 0 : index
    %c0_0 = arith.constant 0 : index
    %0 = vector.load %arg1[%c0, %c0_0] : memref<384x128xbf16, #tpu.memory_space<vmem>>, vector<384x128xbf16>
    %c0_1 = arith.constant 0 : index
    %c0_2 = arith.constant 0 : index
    %1 = vector.load %arg2[%c0_1, %c0_2] : memref<256x128xbf16, #tpu.memory_space<vmem>>, vector<256x128xbf16>
    %cst = arith.constant dense<0.000000e+00> : vector<384x256xf32>
    %2 = tpu.matmul %0, %1, %cst {dimension_numbers = #tpu.dot_dimension_numbers<[1], [1], [0], [0], [0, 0, 1, 0], [], []>} : vector<384x128xbf16>, vector<256x128xbf16>, vector<384x256xf32> -> vector<384x256xf32>
    %c0_3 = arith.constant 0 : index
    %c0_4 = arith.constant 0 : index
    %3 = vector.load %arg3[%c0_3, %c0_4] : memref<1x256xf32, #tpu.memory_space<vmem>>, vector<1x256xf32>
    %4 = vector.broadcast %3 : vector<1x256xf32> to vector<384x256xf32>
    %5 = arith.addf %2, %4 : vector<384x256xf32>
    %6 = vector.extract_strided_slice %5 {offsets = [0, 0], sizes = [384, 128], strides = [1, 1]} : vector<384x256xf32> to vector<384x128xf32>
    %7 = arith.truncf %6 : vector<384x128xf32> to vector<384x128xbf16>
    %c0_5 = arith.constant 0 : index
    %c0_6 = arith.constant 0 : index
    %8 = vector.load %arg4[%c0_5, %c0_6] : memref<384x128xbf16, #tpu.memory_space<vmem>>, vector<384x128xbf16>
    tpu.vector_store %arg4[%c0_5, %c0_6], %7 {strides = array<i32>} : memref<384x128xbf16, #tpu.memory_space<vmem>>, vector<384x128xbf16>,
    %9 = vector.extract_strided_slice %5 {offsets = [0, 128], sizes = [384, 128], strides = [1, 1]} : vector<384x256xf32> to vector<384x128xf32>
    %10 = arith.truncf %9 : vector<384x128xf32> to vector<384x128xbf16>
    %c0_7 = arith.constant 0 : index
    %c0_8 = arith.constant 0 : index
    %11 = vector.load %arg5[%c0_7, %c0_8] : memref<384x128xbf16, #tpu.memory_space<vmem>>, vector<384x128xbf16>
    tpu.vector_store %arg5[%c0_7, %c0_8], %10 {strides = array<i32>} : memref<384x128xbf16, #tpu.memory_space<vmem>>, vector<384x128xbf16>,
    return
  }
  func.func @transform_0(%arg0: i32) -> (i32, i32) {
    %c0_i32 = arith.constant 0 : i32
    %c0_i32_0 = arith.constant 0 : i32
    return %arg0, %c0_i32 : i32, i32
  }
  func.func @transform_1(%arg0: i32) -> (i32, i32) {
    %c0_i32 = arith.constant 0 : i32
    %c0_i32_0 = arith.constant 0 : i32
    %c0_i32_1 = arith.constant 0 : i32
    return %c0_i32, %c0_i32_0 : i32, i32
  }
  func.func @transform_2(%arg0: i32) -> (i32, i32) {
    %c0_i32 = arith.constant 0 : i32
    %c0_i32_0 = arith.constant 0 : i32
    %c0_i32_1 = arith.constant 0 : i32
    return %c0_i32, %c0_i32_0 : i32, i32
  }
  func.func @transform_3(%arg0: i32) -> (i32, i32) {
    %c0_i32 = arith.constant 0 : i32
    %c0_i32_0 = arith.constant 0 : i32
    return %arg0, %c0_i32 : i32, i32
  }
  func.func @transform_4(%arg0: i32) -> (i32, i32) {
    %c0_i32 = arith.constant 0 : i32
    %c0_i32_0 = arith.constant 0 : i32
    return %arg0, %c0_i32 : i32, i32
  }
}

module attributes {stable_mosaic.version = 11 : i64} {
  func.func @_kv_proj_kernel(%arg0: i32, %arg1: memref<384x128xbf16, #tpu.memory_space<vmem>>, %arg2: memref<256x128xbf16, #tpu.memory_space<vmem>>, %arg3: memref<1x256xf32, #tpu.memory_space<vmem>>, %arg4: memref<384x128xbf16, #tpu.memory_space<vmem>>, %arg5: memref<384x128xbf16, #tpu.memory_space<vmem>>) attributes {dimension_semantics = [#tpu.dimension_semantics<parallel>], iteration_bounds = array<i64: 1>, scalar_prefetch = 0 : i64, scratch_operands = 0 : i64, tpu.core_type = #tpu.core_type<tc>, window_params = [{transform_indices = @transform_0, window_bounds = array<i64: 384, 128>}, {pipeline_mode = #tpu.pipeline_mode<synchronous>, transform_indices = @transform_1, window_bounds = array<i64: 256, 128>}, {pipeline_mode = #tpu.pipeline_mode<synchronous>, transform_indices = @transform_2, window_bounds = array<i64: 1, 256>}, {transform_indices = @transform_3, window_bounds = array<i64: 384, 128>}, {transform_indices = @transform_4, window_bounds = array<i64: 384, 128>}]} {
    %c0 = arith.constant 0 : index
    %c0_0 = arith.constant 0 : index
    %0 = vector.load %arg1[%c0, %c0_0] : memref<384x128xbf16, #tpu.memory_space<vmem>>, vector<384x128xbf16>
    %c0_1 = arith.constant 0 : index
    %c0_2 = arith.constant 0 : index
    %1 = vector.load %arg2[%c0_1, %c0_2] : memref<256x128xbf16, #tpu.memory_space<vmem>>, vector<256x128xbf16>
    %cst = arith.constant dense<0.000000e+00> : vector<384x256xf32>
    %2 = tpu.matmul %0, %1, %cst {dimension_numbers = #tpu.dot_dimension_numbers<[1], [1], [0], [0], [0, 0, 1, 0], [], []>} : vector<384x128xbf16>, vector<256x128xbf16>, vector<384x256xf32> -> vector<384x256xf32>
    %c0_3 = arith.constant 0 : index
    %c0_4 = arith.constant 0 : index
    %3 = vector.load %arg3[%c0_3, %c0_4] : memref<1x256xf32, #tpu.memory_space<vmem>>, vector<1x256xf32>
    %4 = vector.broadcast %3 : vector<1x256xf32> to vector<384x256xf32>
    %5 = arith.addf %2, %4 : vector<384x256xf32>
    %6 = vector.extract_strided_slice %5 {offsets = [0, 0], sizes = [384, 128], strides = [1, 1]} : vector<384x256xf32> to vector<384x128xf32>
    %7 = arith.truncf %6 : vector<384x128xf32> to vector<384x128xbf16>
    %c0_5 = arith.constant 0 : index
    %c0_6 = arith.constant 0 : index
    %8 = vector.load %arg4[%c0_5, %c0_6] : memref<384x128xbf16, #tpu.memory_space<vmem>>, vector<384x128xbf16>
    tpu.vector_store %arg4[%c0_5, %c0_6], %7 {strides = array<i32>} : memref<384x128xbf16, #tpu.memory_space<vmem>>, vector<384x128xbf16>,
    %9 = vector.extract_strided_slice %5 {offsets = [0, 128], sizes = [384, 128], strides = [1, 1]} : vector<384x256xf32> to vector<384x128xf32>
    %10 = arith.truncf %9 : vector<384x128xf32> to vector<384x128xbf16>
    %c0_7 = arith.constant 0 : index
    %c0_8 = arith.constant 0 : index
    %11 = vector.load %arg5[%c0_7, %c0_8] : memref<384x128xbf16, #tpu.memory_space<vmem>>, vector<384x128xbf16>
    tpu.vector_store %arg5[%c0_7, %c0_8], %10 {strides = array<i32>} : memref<384x128xbf16, #tpu.memory_space<vmem>>, vector<384x128xbf16>,
    return
  }
  func.func @transform_0(%arg0: i32) -> (i32, i32) {
    %c0_i32 = arith.constant 0 : i32
    %c0_i32_0 = arith.constant 0 : i32
    return %arg0, %c0_i32 : i32, i32
  }
  func.func @transform_1(%arg0: i32) -> (i32, i32) {
    %c0_i32 = arith.constant 0 : i32
    %c0_i32_0 = arith.constant 0 : i32
    %c0_i32_1 = arith.constant 0 : i32
    return %c0_i32, %c0_i32_0 : i32, i32
  }
  func.func @transform_2(%arg0: i32) -> (i32, i32) {
    %c0_i32 = arith.constant 0 : i32
    %c0_i32_0 = arith.constant 0 : i32
    %c0_i32_1 = arith.constant 0 : i32
    return %c0_i32, %c0_i32_0 : i32, i32
  }
  func.func @transform_3(%arg0: i32) -> (i32, i32) {
    %c0_i32 = arith.constant 0 : i32
    %c0_i32_0 = arith.constant 0 : i32
    return %arg0, %c0_i32 : i32, i32
  }
  func.func @transform_4(%arg0: i32) -> (i32, i32) {
    %c0_i32 = arith.constant 0 : i32
    %c0_i32_0 = arith.constant 0 : i32
    return %arg0, %c0_i32 : i32, i32
  }
}

</mosaic_0001>

<llo_original>
// kernel: tpu_custom_call.1
$region0: #{tpu_custom_call.1}
  #allocation0 [shape = 'u32[]', space=smem, size = 0x4, offset = 0x4, fixed_abs, tag = 'smem constant byte address 0x4 - core index']
  #allocation1 [shape = 'u32[144,128]{1,0:T(1,128)}', space=vmem, size = 0x12000, scoped, tag = 'internal scratch']
  %s0 = inlined_call_operand.hbm [shape: bf16[384,128], index: 0, kind: input, shape index: {}]
  %s1 = inlined_call_operand.hbm [shape: bf16[256,128], index: 1, kind: input, shape index: {}]
  %s2 = inlined_call_operand.vmem [shape: f32[1,256], index: 2, kind: input, shape index: {}]
  %s3 = inlined_call_operand.hbm [shape: bf16[384,128], index: 3, kind: output, shape index: {0}]
  %s4 = inlined_call_operand.hbm [shape: bf16[384,128], index: 4, kind: output, shape index: {1}]
  %5 = xla_tuple %s3, %s4
  %s6 = sld [smem:[#allocation0]]
  $region38: #{tpu_custom_call.1} parent=0
    _
  %s8 = ssub.s32 1, %s6
  %s9 = scalar_select 0, %s8, %s6
  $region1: #{tpu_custom_call.1} parent=0
    #allocation2 [shape = 'u8[98304]{0}', space=vmem, size = 0x18000, scoped, tag = 'input window, operand 0, single buffered']
    #allocation3 [shape = 's32[1]{0}', space=sflag, size = 0x4, scoped, tag = 'scoped memory for tpu_custom_call.1']
    #allocation4 [shape = 's32[1]{0}', space=sflag, size = 0x4, scoped, tag = 'scoped memory for tpu_custom_call.1']
    #allocation5 [shape = 'u8[65536]{0}', space=vmem, size = 0x10000, scoped, tag = 'input window, operand 1, single buffered']
    #allocation6 [shape = 's32[1]{0}', space=sflag, size = 0x4, scoped, tag = 'scoped memory for tpu_custom_call.1']
    #allocation7 [shape = 'u8[98304]{0}', space=vmem, size = 0x18000, scoped, tag = 'output window, operand 0, single buffered']
    #allocation8 [shape = 'u8[98304]{0}', space=vmem, size = 0x18000, scoped, tag = 'output window, operand 1, single buffered']
    #allocation9 [shape = 's32[1]{0}', space=sflag, size = 0x4, scoped, tag = 'scoped memory for tpu_custom_call.1']
    %10 = vsyncpa [#allocation3], 0
    %11 = vsyncpa [#allocation6], 0
    %12 = vsyncpa [#allocation4], 0
    %13 = vsyncpa [#allocation9], 0
    // Predicated region
    $region2: #{tpu_custom_call.1} parent=1 // pred_check
      _
    $region3: #{tpu_custom_call.1} parent=1 // pred_check_branch
      %15 = sbr.rel (0) target = $region5
    $region4: #{tpu_custom_call.1} parent=1 // pred_region
      %s17 = ssub.s32 3072, 3072
      %18 = vsyncadd [#allocation3], %s17
      %s19 = sshll.u32 [#allocation2], 4
      %s20 = int_to_ptr.vmem [resolvable:$true] %s19
      %25 = dma.hbm_to_vmem [thread:$0]  %s0, 3072, %s20, [#allocation3], 64, 64, 4
    $region5: #{tpu_custom_call.1} parent=1 // pred_fallthru
      _
    // Predicated region
    $region6: #{tpu_custom_call.1} parent=1 // pred_check
      _
    $region7: #{tpu_custom_call.1} parent=1 // pred_check_branch
      %27 = sbr.rel (0) target = $region9
    $region8: #{tpu_custom_call.1} parent=1 // pred_region
      %s29 = ssub.s32 2048, 2048
      %30 = vsyncadd [#allocation6], %s29
      %s31 = sshll.u32 [#allocation5], 4
      %s32 = int_to_ptr.vmem [resolvable:$true] %s31
      %37 = dma.hbm_to_vmem [thread:$0]  %s1, 2048, %s32, [#allocation6], 64, 64, 4
    $region9: #{tpu_custom_call.1} parent=1 // pred_fallthru
      _
    // Predicated region
    $region10: #{tpu_custom_call.1} parent=1 // pred_check
      _
    $region11: #{tpu_custom_call.1} parent=1 // pred_check_branch
      %39 = sbr.rel (0) target = $region13
    $region12: #{tpu_custom_call.1} parent=1 // pred_region
      _
    $region13: #{tpu_custom_call.1} parent=1 // pred_fallthru
      _
    // Predicated region
    $region14: #{tpu_custom_call.1} parent=1 // pred_check
      _
    $region15: #{tpu_custom_call.1} parent=1 // pred_check_branch
      %41 = sbr.rel (0) target = $region17
    $region16: #{tpu_custom_call.1} parent=1 // pred_region
      %42 = dma.done [#allocation3], 3072
    $region17: #{tpu_custom_call.1} parent=1 // pred_fallthru
      _
    // Predicated region
    $region18: #{tpu_custom_call.1} parent=1 // pred_check
      _
    $region19: #{tpu_custom_call.1} parent=1 // pred_check_branch
      %44 = sbr.rel (0) target = $region21
    $region20: #{tpu_custom_call.1} parent=1 // pred_region
      %45 = dma.done [#allocation6], 2048
    $region21: #{tpu_custom_call.1} parent=1 // pred_fallthru
      _
    %v47 = vld [vmem:[#allocation2] sm:$0xf]
    %v48 = vld [vmem:[#allocation2 + $0x4] sm:$0xf]
    %v49 = vld [vmem:[#allocation2 + $0x8] sm:$0xf]
    %v50 = vld [vmem:[#allocation2 + $0xc] sm:$0xf]
    %v51 = vld [vmem:[#allocation2 + $0x10] sm:$0xf]
    %v52 = vld [vmem:[#allocation2 + $0x14] sm:$0xf]
    %v53 = vld [vmem:[#allocation2 + $0x18] sm:$0xf]
    %v54 = vld [vmem:[#allocation2 + $0x1c] sm:$0xf]
    %v55 = vld [vmem:[#allocation2 + $0x20] sm:$0xf]
    %v56 = vld [vmem:[#allocation2 + $0x24] sm:$0xf]
    %v57 = vld [vmem:[#allocation2 + $0x28] sm:$0xf]
    %v58 = vld [vmem:[#allocation2 + $0x2c] sm:$0xf]
    %v59 = vld [vmem:[#allocation2 + $0x30] sm:$0xf]
    %v60 = vld [vmem:[#allocation2 + $0x34] sm:$0xf]
    %v61 = vld [vmem:[#allocation2 + $0x38] sm:$0xf]
    %v62 = vld [vmem:[#allocation2 + $0x3c] sm:$0xf]
    %v63 = vld [vmem:[#allocation2 + $0x40] sm:$0xf]
    %v64 = vld [vmem:[#allocation2 + $0x44] sm:$0xf]
    %v65 = vld [vmem:[#allocation2 + $0x48] sm:$0xf]
    %v66 = vld [vmem:[#allocation2 + $0x4c] sm:$0xf]
    %v67 = vld [vmem:[#allocation2 + $0x50] sm:$0xf]
    %v68 = vld [vmem:[#allocation2 + $0x54] sm:$0xf]
    %v69 = vld [vmem:[#allocation2 + $0x58] sm:$0xf]
    %v70 = vld [vmem:[#allocation2 + $0x5c] sm:$0xf]
    %v71 = vld [vmem:[#allocation2 + $0x60] sm:$0xf]
    %v72 = vld [vmem:[#allocation2 + $0x64] sm:$0xf]
    %v73 = vld [vmem:[#allocation2 + $0x68] sm:$0xf]
    %v74 = vld [vmem:[#allocation2 + $0x6c] sm:$0xf]
    %v75 = vld [vmem:[#allocation2 + $0x70] sm:$0xf]
    %v76 = vld [vmem:[#allocation2 + $0x74] sm:$0xf]
    %v77 = vld [vmem:[#allocation2 + $0x78] sm:$0xf]
    %v78 = vld [vmem:[#allocation2 + $0x7c] sm:$0xf]
    %v79 = vld [vmem:[#allocation2 + $0x80] sm:$0xf]
    %v80 = vld [vmem:[#allocation2 + $0x84] sm:$0xf]
    %v81 = vld [vmem:[#allocation2 + $0x88] sm:$0xf]
    %v82 = vld [vmem:[#allocation2 + $0x8c] sm:$0xf]
    %v83 = vld [vmem:[#allocation2 + $0x90] sm:$0xf]
    %v84 = vld [vmem:[#allocation2 + $0x94] sm:$0xf]
    %v85 = vld [vmem:[#allocation2 + $0x98] sm:$0xf]
    %v86 = vld [vmem:[#allocation2 + $0x9c] sm:$0xf]
    %v87 = vld [vmem:[#allocation2 + $0xa0] sm:$0xf]
    %v88 = vld [vmem:[#allocation2 + $0xa4] sm:$0xf]
    %v89 = vld [vmem:[#allocation2 + $0xa8] sm:$0xf]
    %v90 = vld [vmem:[#allocation2 + $0xac] sm:$0xf]
    %v91 = vld [vmem:[#allocation2 + $0xb0] sm:$0xf]
    %v92 = vld [vmem:[#allocation2 + $0xb4] sm:$0xf]
    %v93 = vld [vmem:[#allocation2 + $0xb8] sm:$0xf]
    %v94 = vld [vmem:[#allocation2 + $0xbc] sm:$0xf]
    %v95 = vld [vmem:[#allocation5] sm:$0xf]
    %v96 = vld [vmem:[#allocation5 + $0x4] sm:$0xf]
    %v97 = vld [vmem:[#allocation5 + $0x8] sm:$0xf]
    %v98 = vld [vmem:[#allocation5 + $0xc] sm:$0xf]
    %v99 = vld [vmem:[#allocation5 + $0x10] sm:$0xf]
    %v100 = vld [vmem:[#allocation5 + $0x14] sm:$0xf]
    %v101 = vld [vmem:[#allocation5 + $0x18] sm:$0xf]
    %v102 = vld [vmem:[#allocation5 + $0x1c] sm:$0xf]
    %v103 = vld [vmem:[#allocation5 + $0x20] sm:$0xf]
    %v104 = vld [vmem:[#allocation5 + $0x24] sm:$0xf]
    %v105 = vld [vmem:[#allocation5 + $0x28] sm:$0xf]
    %v106 = vld [vmem:[#allocation5 + $0x2c] sm:$0xf]
    %v107 = vld [vmem:[#allocation5 + $0x30] sm:$0xf]
    %v108 = vld [vmem:[#allocation5 + $0x34] sm:$0xf]
    %v109 = vld [vmem:[#allocation5 + $0x38] sm:$0xf]
    %v110 = vld [vmem:[#allocation5 + $0x3c] sm:$0xf]
    %v111 = vld [vmem:[#allocation5 + $0x40] sm:$0xf]
    %v112 = vld [vmem:[#allocation5 + $0x44] sm:$0xf]
    %v113 = vld [vmem:[#allocation5 + $0x48] sm:$0xf]
    %v114 = vld [vmem:[#allocation5 + $0x4c] sm:$0xf]
    %v115 = vld [vmem:[#allocation5 + $0x50] sm:$0xf]
    %v116 = vld [vmem:[#allocation5 + $0x54] sm:$0xf]
    %v117 = vld [vmem:[#allocation5 + $0x58] sm:$0xf]
    %v118 = vld [vmem:[#allocation5 + $0x5c] sm:$0xf]
    %v119 = vld [vmem:[#allocation5 + $0x60] sm:$0xf]
    %v120 = vld [vmem:[#allocation5 + $0x64] sm:$0xf]
    %v121 = vld [vmem:[#allocation5 + $0x68] sm:$0xf]
    %v122 = vld [vmem:[#allocation5 + $0x6c] sm:$0xf]
    %v123 = vld [vmem:[#allocation5 + $0x70] sm:$0xf]
    %v124 = vld [vmem:[#allocation5 + $0x74] sm:$0xf]
    %v125 = vld [vmem:[#allocation5 + $0x78] sm:$0xf]
    %v126 = vld [vmem:[#allocation5 + $0x7c] sm:$0xf]
    %v127 = vld [vmem:[%s2] sm:$0x3]
    %v129 = vlaneseq
    %v130 = vshrl.u32 %v129, 7
    %v131 = vsub.s32 0, %v130
    %v132 = vrot.slane %v127, %v131
    %v133 = vlaneseq
    %v134 = vshrl.u32 %v133, 7
    %v135 = vsub.s32 1, %v134
    %v136 = vrot.slane %v127, %v135
    %v187 = vunpack.c.l.b16 %v47
    %v188 = vunpack.c.l.b16 %v48
    %v189 = vunpack.c.l.b16 %v49
    %v190 = vunpack.c.l.b16 %v50
    %v191 = vunpack.c.l.b16 %v51
    %v192 = vunpack.c.l.b16 %v52
    %v193 = vunpack.c.l.b16 %v53
    %v194 = vunpack.c.l.b16 %v54
    %v195 = vunpack.c.l.b16 %v55
    %v196 = vunpack.c.l.b16 %v56
    %v197 = vunpack.c.l.b16 %v57
    %v198 = vunpack.c.l.b16 %v58
    %v199 = vunpack.c.l.b16 %v59
    %v200 = vunpack.c.l.b16 %v60
    %v201 = vunpack.c.l.b16 %v61
    %v202 = vunpack.c.l.b16 %v62
    %v203 = vunpack.c.l.b16 %v63
    %v204 = vunpack.c.l.b16 %v64
    %v205 = vunpack.c.l.b16 %v65
    %v206 = vunpack.c.l.b16 %v66
    %v207 = vunpack.c.l.b16 %v67
    %v208 = vunpack.c.l.b16 %v68
    %v209 = vunpack.c.l.b16 %v69
    %v210 = vunpack.c.l.b16 %v70
    %v211 = vunpack.c.l.b16 %v71
    %v212 = vunpack.c.l.b16 %v72
    %v213 = vunpack.c.l.b16 %v73
    %v214 = vunpack.c.l.b16 %v74
    %v215 = vunpack.c.l.b16 %v75
    %v216 = vunpack.c.l.b16 %v76
    %v217 = vunpack.c.l.b16 %v77
    %v218 = vunpack.c.l.b16 %v78
    %v219 = vunpack.c.l.b16 %v79
    %v220 = vunpack.c.l.b16 %v80
    %v221 = vunpack.c.l.b16 %v81
    %v222 = vunpack.c.l.b16 %v82
    %v223 = vunpack.c.l.b16 %v83
    %v224 = vunpack.c.l.b16 %v84
    %v225 = vunpack.c.l.b16 %v85
    %v226 = vunpack.c.l.b16 %v86
    %v227 = vunpack.c.l.b16 %v87
    %v228 = vunpack.c.l.b16 %v88
    %v229 = vunpack.c.l.b16 %v89
    %v230 = vunpack.c.l.b16 %v90
    %v231 = vunpack.c.l.b16 %v91
    %v232 = vunpack.c.l.b16 %v92
    %v233 = vunpack.c.l.b16 %v93
    %v234 = vunpack.c.l.b16 %v94
    %v235 = vpack.c.b16 %v188, %v187
    %v236 = vpack.c.b16 %v190, %v189
    %v237 = vpack.c.b16 %v192, %v191
    %v238 = vpack.c.b16 %v194, %v193
    %v239 = vpack.c.b16 %v196, %v195
    %v240 = vpack.c.b16 %v198, %v197
    %v241 = vpack.c.b16 %v200, %v199
    %v242 = vpack.c.b16 %v202, %v201
    %v243 = vpack.c.b16 %v204, %v203
    %v244 = vpack.c.b16 %v206, %v205
    %v245 = vpack.c.b16 %v208, %v207
    %v246 = vpack.c.b16 %v210, %v209
    %v247 = vpack.c.b16 %v212, %v211
    %v248 = vpack.c.b16 %v214, %v213
    %v249 = vpack.c.b16 %v216, %v215
    %v250 = vpack.c.b16 %v218, %v217
    %v251 = vpack.c.b16 %v220, %v219
    %v252 = vpack.c.b16 %v222, %v221
    %v253 = vpack.c.b16 %v224, %v223
    %v254 = vpack.c.b16 %v226, %v225
    %v255 = vpack.c.b16 %v228, %v227
    %v256 = vpack.c.b16 %v230, %v229
    %v257 = vpack.c.b16 %v232, %v231
    %v258 = vpack.c.b16 %v234, %v233
    %v315 = vunpack.c.l.b16 %v95
    %v316 = vunpack.c.l.b16 %v96
    %v317 = vunpack.c.l.b16 %v97
    %v318 = vunpack.c.l.b16 %v98
    %v319 = vunpack.c.l.b16 %v99
    %v320 = vunpack.c.l.b16 %v100
    %v321 = vunpack.c.l.b16 %v101
    %v322 = vunpack.c.l.b16 %v102
    %v323 = vunpack.c.l.b16 %v103
    %v324 = vunpack.c.l.b16 %v104
    %v325 = vunpack.c.l.b16 %v105
    %v326 = vunpack.c.l.b16 %v106
    %v327 = vunpack.c.l.b16 %v107
    %v328 = vunpack.c.l.b16 %v108
    %v329 = vunpack.c.l.b16 %v109
    %v330 = vunpack.c.l.b16 %v110
    %v331 = vunpack.c.l.b16 %v111
    %v332 = vunpack.c.l.b16 %v112
    %v333 = vunpack.c.l.b16 %v113
    %v334 = vunpack.c.l.b16 %v114
    %v335 = vunpack.c.l.b16 %v115
    %v336 = vunpack.c.l.b16 %v116
    %v337 = vunpack.c.l.b16 %v117
    %v338 = vunpack.c.l.b16 %v118
    %v339 = vunpack.c.l.b16 %v119
    %v340 = vunpack.c.l.b16 %v120
    %v341 = vunpack.c.l.b16 %v121
    %v342 = vunpack.c.l.b16 %v122
    %v343 = vunpack.c.l.b16 %v123
    %v344 = vunpack.c.l.b16 %v124
    %v345 = vunpack.c.l.b16 %v125
    %v346 = vunpack.c.l.b16 %v126
    %v347 = vpack.c.b16 %v316, %v315
    %v348 = vpack.c.b16 %v318, %v317
    %v349 = vpack.c.b16 %v320, %v319
    %v350 = vpack.c.b16 %v322, %v321
    %v351 = vpack.c.b16 %v324, %v323
    %v352 = vpack.c.b16 %v326, %v325
    %v353 = vpack.c.b16 %v328, %v327
    %v354 = vpack.c.b16 %v330, %v329
    %v355 = vpack.c.b16 %v332, %v331
    %v356 = vpack.c.b16 %v334, %v333
    %v357 = vpack.c.b16 %v336, %v335
    %v358 = vpack.c.b16 %v338, %v337
    %v359 = vpack.c.b16 %v340, %v339
    %v360 = vpack.c.b16 %v342, %v341
    %v361 = vpack.c.b16 %v344, %v343
    %v362 = vpack.c.b16 %v346, %v345
    %379 = vmatprep.subr.bf16.mxu0 0
    %380 = vmatpush1.bf16.xpose.msra.mxu0 %v354
    %381 = vmatprep.subr.bf16.mxu0 0
    %382 = vmatpush1.bf16.xpose.msra.mxu0 %v353
    %383 = vmatprep.subr.bf16.mxu0 0
    %384 = vmatpush1.bf16.xpose.msra.mxu0 %v352
    %385 = vmatprep.subr.bf16.mxu0 0
    %386 = vmatpush1.bf16.xpose.msra.mxu0 %v351
    %387 = vmatprep.subr.bf16.mxu0 0
    %388 = vmatpush1.bf16.xpose.msra.mxu0 %v350
    %389 = vmatprep.subr.bf16.mxu0 0
    %390 = vmatpush1.bf16.xpose.msra.mxu0 %v349
    %391 = vmatprep.subr.bf16.mxu0 0
    %392 = vmatpush1.bf16.xpose.msra.mxu0 %v348
    %393 = vmatprep.subr.bf16.mxu0 0
    %394 = vmatpush1.bf16.xpose.msra.mxu0 %v347
    %395 = vmatprep.subr.bf16.mxu0 0
    %396 = vmatpush2.bf16.xpose.msra.mxu0 %v362
    %397 = vmatprep.subr.bf16.mxu0 0
    %398 = vmatpush2.bf16.xpose.msra.mxu0 %v361
    %399 = vmatprep.subr.bf16.mxu0 0
    %400 = vmatpush2.bf16.xpose.msra.mxu0 %v360
    %401 = vmatprep.subr.bf16.mxu0 0
    %402 = vmatpush2.bf16.xpose.msra.mxu0 %v359
    %403 = vmatprep.subr.bf16.mxu0 0
    %404 = vmatpush2.bf16.xpose.msra.mxu0 %v358
    %405 = vmatprep.subr.bf16.mxu0 0
    %406 = vmatpush2.bf16.xpose.msra.mxu0 %v357
    %407 = vmatprep.subr.bf16.mxu0 0
    %408 = vmatpush2.bf16.xpose.msra.mxu0 %v356
    %409 = vmatprep.subr.bf16.mxu0 0
    %410 = vmatpush2.bf16.xpose.msra.mxu0 %v355
    %411 = vmatprep.mubr.bf16.mxu0 0
    %412 = vmatmul.mubr.bf16.gmra.mxu0 %v235
    %v413 = vpop.f32.mrf.mxu0
    %v414 = vadd.f32 %v132, %v413
    %v415 = vpop.f32.mrf.mxu0
    %v416 = vadd.f32 %v136, %v415
    %v417 = vpop.f32.mrf.mxu0
    %v418 = vadd.f32 %v132, %v417
    %v419 = vpop.f32.mrf.mxu0
    %v420 = vadd.f32 %v136, %v419
    %421 = vmatprep.mubr.bf16.mxu0 0
    %422 = vmatmul.mubr.bf16.gmra.mxu0 %v236
    %v423 = vpop.f32.mrf.mxu0
    %v424 = vadd.f32 %v132, %v423
    %v425 = vpop.f32.mrf.mxu0
    %v426 = vadd.f32 %v136, %v425
    %v427 = vpop.f32.mrf.mxu0
    %v428 = vadd.f32 %v132, %v427
    %v429 = vpop.f32.mrf.mxu0
    %v430 = vadd.f32 %v136, %v429
    %431 = vmatprep.mubr.bf16.mxu0 0
    %432 = vmatmul.mubr.bf16.gmra.mxu0 %v237
    %v433 = vpop.f32.mrf.mxu0
    %v434 = vadd.f32 %v132, %v433
    %v435 = vpop.f32.mrf.mxu0
    %v436 = vadd.f32 %v136, %v435
    %v437 = vpop.f32.mrf.mxu0
    %v438 = vadd.f32 %v132, %v437
    %v439 = vpop.f32.mrf.mxu0
    %v440 = vadd.f32 %v136, %v439
    %441 = vmatprep.mubr.bf16.mxu0 0
    %442 = vmatmul.mubr.bf16.gmra.mxu0 %v238
    %v443 = vpop.f32.mrf.mxu0
    %v444 = vadd.f32 %v132, %v443
    %v445 = vpop.f32.mrf.mxu0
    %v446 = vadd.f32 %v136, %v445
    %v447 = vpop.f32.mrf.mxu0
    %v448 = vadd.f32 %v132, %v447
    %v449 = vpop.f32.mrf.mxu0
    %v450 = vadd.f32 %v136, %v449
    %451 = vmatprep.mubr.bf16.mxu0 0
    %452 = vmatmul.mubr.bf16.gmra.mxu0 %v239
    %v453 = vpop.f32.mrf.mxu0
    %v454 = vadd.f32 %v132, %v453
    %v455 = vpop.f32.mrf.mxu0
    %v456 = vadd.f32 %v136, %v455
    %v457 = vpop.f32.mrf.mxu0
    %v458 = vadd.f32 %v132, %v457
    %v459 = vpop.f32.mrf.mxu0
    %v460 = vadd.f32 %v136, %v459
    %461 = vmatprep.mubr.bf16.mxu0 0
    %462 = vmatmul.mubr.bf16.gmra.mxu0 %v240
    %v463 = vpop.f32.mrf.mxu0
    %v464 = vadd.f32 %v132, %v463
    %v465 = vpop.f32.mrf.mxu0
    %v466 = vadd.f32 %v136, %v465
    %v467 = vpop.f32.mrf.mxu0
    %v468 = vadd.f32 %v132, %v467
    %v469 = vpop.f32.mrf.mxu0
    %v470 = vadd.f32 %v136, %v469
    %471 = vmatprep.mubr.bf16.mxu0 0
    %472 = vmatmul.mubr.bf16.gmra.mxu0 %v241
    %v473 = vpop.f32.mrf.mxu0
    %v474 = vadd.f32 %v132, %v473
    %v475 = vpop.f32.mrf.mxu0
    %v476 = vadd.f32 %v136, %v475
    %v477 = vpop.f32.mrf.mxu0
    %v478 = vadd.f32 %v132, %v477
    %v479 = vpop.f32.mrf.mxu0
    %v480 = vadd.f32 %v136, %v479
    %481 = vmatprep.mubr.bf16.mxu0 0
    %482 = vmatmul.mubr.bf16.gmra.mxu0 %v242
    %v483 = vpop.f32.mrf.mxu0
    %v484 = vadd.f32 %v132, %v483
    %v485 = vpop.f32.mrf.mxu0
    %v486 = vadd.f32 %v136, %v485
    %v487 = vpop.f32.mrf.mxu0
    %v488 = vadd.f32 %v132, %v487
    %v489 = vpop.f32.mrf.mxu0
    %v490 = vadd.f32 %v136, %v489
    %491 = vmatprep.mubr.bf16.mxu0 0
    %492 = vmatmul.mubr.bf16.gmra.mxu0 %v243
    %v493 = vpop.f32.mrf.mxu0
    %v494 = vadd.f32 %v132, %v493
    %v495 = vpop.f32.mrf.mxu0
    %v496 = vadd.f32 %v136, %v495
    %v497 = vpop.f32.mrf.mxu0
    %v498 = vadd.f32 %v132, %v497
    %v499 = vpop.f32.mrf.mxu0
    %v500 = vadd.f32 %v136, %v499
    %501 = vmatprep.mubr.bf16.mxu0 0
    %502 = vmatmul.mubr.bf16.gmra.mxu0 %v244
    %v503 = vpop.f32.mrf.mxu0
    %v504 = vadd.f32 %v132, %v503
    %v505 = vpop.f32.mrf.mxu0
    %v506 = vadd.f32 %v136, %v505
    %v507 = vpop.f32.mrf.mxu0
    %v508 = vadd.f32 %v132, %v507
    %v509 = vpop.f32.mrf.mxu0
    %v510 = vadd.f32 %v136, %v509
    %511 = vmatprep.mubr.bf16.mxu0 0
    %512 = vmatmul.mubr.bf16.gmra.mxu0 %v245
    %v513 = vpop.f32.mrf.mxu0
    %v514 = vadd.f32 %v132, %v513
    %v515 = vpop.f32.mrf.mxu0
    %v516 = vadd.f32 %v136, %v515
    %v517 = vpop.f32.mrf.mxu0
    %v518 = vadd.f32 %v132, %v517
    %v519 = vpop.f32.mrf.mxu0
    %v520 = vadd.f32 %v136, %v519
    %521 = vmatprep.mubr.bf16.mxu0 0
    %522 = vmatmul.mubr.bf16.gmra.mxu0 %v246
    %v523 = vpop.f32.mrf.mxu0
    %v524 = vadd.f32 %v132, %v523
    %v525 = vpop.f32.mrf.mxu0
    %v526 = vadd.f32 %v136, %v525
    %v527 = vpop.f32.mrf.mxu0
    %v528 = vadd.f32 %v132, %v527
    %v529 = vpop.f32.mrf.mxu0
    %v530 = vadd.f32 %v136, %v529
    %531 = vmatprep.mubr.bf16.mxu0 0
    %532 = vmatmul.mubr.bf16.gmra.mxu0 %v247
    %v533 = vpop.f32.mrf.mxu0
    %v534 = vadd.f32 %v132, %v533
    %v535 = vpop.f32.mrf.mxu0
    %v536 = vadd.f32 %v136, %v535
    %v537 = vpop.f32.mrf.mxu0
    %v538 = vadd.f32 %v132, %v537
    %v539 = vpop.f32.mrf.mxu0
    %v540 = vadd.f32 %v136, %v539
    %541 = vmatprep.mubr.bf16.mxu0 0
    %542 = vmatmul.mubr.bf16.gmra.mxu0 %v248
    %v543 = vpop.f32.mrf.mxu0
    %v544 = vadd.f32 %v132, %v543
    %v545 = vpop.f32.mrf.mxu0
    %v546 = vadd.f32 %v136, %v545
    %v547 = vpop.f32.mrf.mxu0
    %v548 = vadd.f32 %v132, %v547
    %v549 = vpop.f32.mrf.mxu0
    %v550 = vadd.f32 %v136, %v549
    %551 = vmatprep.mubr.bf16.mxu0 0
    %552 = vmatmul.mubr.bf16.gmra.mxu0 %v249
    %v553 = vpop.f32.mrf.mxu0
    %v554 = vadd.f32 %v132, %v553
    %v555 = vpop.f32.mrf.mxu0
    %v556 = vadd.f32 %v136, %v555
    %v557 = vpop.f32.mrf.mxu0
    %v558 = vadd.f32 %v132, %v557
    %v559 = vpop.f32.mrf.mxu0
    %v560 = vadd.f32 %v136, %v559
    %561 = vmatprep.mubr.bf16.mxu0 0
    %562 = vmatmul.mubr.bf16.gmra.mxu0 %v250
    %v563 = vpop.f32.mrf.mxu0
    %v564 = vadd.f32 %v132, %v563
    %v565 = vpop.f32.mrf.mxu0
    %v566 = vadd.f32 %v136, %v565
    %v567 = vpop.f32.mrf.mxu0
    %v568 = vadd.f32 %v132, %v567
    %v569 = vpop.f32.mrf.mxu0
    %v570 = vadd.f32 %v136, %v569
    %571 = vmatprep.mubr.bf16.mxu0 0
    %572 = vmatmul.mubr.bf16.gmra.mxu0 %v251
    %v573 = vpop.f32.mrf.mxu0
    %v574 = vadd.f32 %v132, %v573
    %v575 = vpop.f32.mrf.mxu0
    %v576 = vadd.f32 %v136, %v575
    %v577 = vpop.f32.mrf.mxu0
    %v578 = vadd.f32 %v132, %v577
    %v579 = vpop.f32.mrf.mxu0
    %v580 = vadd.f32 %v136, %v579
    %581 = vmatprep.mubr.bf16.mxu0 0
    %582 = vmatmul.mubr.bf16.gmra.mxu0 %v252
    %v583 = vpop.f32.mrf.mxu0
    %v584 = vadd.f32 %v132, %v583
    %v585 = vpop.f32.mrf.mxu0
    %v586 = vadd.f32 %v136, %v585
    %v587 = vpop.f32.mrf.mxu0
    %v588 = vadd.f32 %v132, %v587
    %v589 = vpop.f32.mrf.mxu0
    %v590 = vadd.f32 %v136, %v589
    %591 = vmatprep.mubr.bf16.mxu0 0
    %592 = vmatmul.mubr.bf16.gmra.mxu0 %v253
    %v593 = vpop.f32.mrf.mxu0
    %v594 = vadd.f32 %v132, %v593
    %v595 = vpop.f32.mrf.mxu0
    %v596 = vadd.f32 %v136, %v595
    %v597 = vpop.f32.mrf.mxu0
    %v598 = vadd.f32 %v132, %v597
    %v599 = vpop.f32.mrf.mxu0
    %v600 = vadd.f32 %v136, %v599
    %601 = vmatprep.mubr.bf16.mxu0 0
    %602 = vmatmul.mubr.bf16.gmra.mxu0 %v254
    %v603 = vpop.f32.mrf.mxu0
    %v604 = vadd.f32 %v132, %v603
    %v605 = vpop.f32.mrf.mxu0
    %v606 = vadd.f32 %v136, %v605
    %v607 = vpop.f32.mrf.mxu0
    %v608 = vadd.f32 %v132, %v607
    %v609 = vpop.f32.mrf.mxu0
    %v610 = vadd.f32 %v136, %v609
    %611 = vmatprep.mubr.bf16.mxu0 0
    %612 = vmatmul.mubr.bf16.gmra.mxu0 %v255
    %v613 = vpop.f32.mrf.mxu0
    %v614 = vadd.f32 %v132, %v613
    %v615 = vpop.f32.mrf.mxu0
    %v616 = vadd.f32 %v136, %v615
    %v617 = vpop.f32.mrf.mxu0
    %v618 = vadd.f32 %v132, %v617
    %v619 = vpop.f32.mrf.mxu0
    %v620 = vadd.f32 %v136, %v619
    %621 = vmatprep.mubr.bf16.mxu0 0
    %622 = vmatmul.mubr.bf16.gmra.mxu0 %v256
    %v623 = vpop.f32.mrf.mxu0
    %v624 = vadd.f32 %v132, %v623
    %v625 = vpop.f32.mrf.mxu0
    %v626 = vadd.f32 %v136, %v625
    %v627 = vpop.f32.mrf.mxu0
    %v628 = vadd.f32 %v132, %v627
    %v629 = vpop.f32.mrf.mxu0
    %v630 = vadd.f32 %v136, %v629
    %631 = vmatprep.mubr.bf16.mxu0 0
    %632 = vmatmul.mubr.bf16.gmra.mxu0 %v257
    %v633 = vpop.f32.mrf.mxu0
    %v634 = vadd.f32 %v132, %v633
    %v635 = vpop.f32.mrf.mxu0
    %v636 = vadd.f32 %v136, %v635
    %v637 = vpop.f32.mrf.mxu0
    %v638 = vadd.f32 %v132, %v637
    %v639 = vpop.f32.mrf.mxu0
    %v640 = vadd.f32 %v136, %v639
    %641 = vmatprep.mubr.bf16.mxu0 0
    %642 = vmatmul.mubr.bf16.gmra.mxu0 %v258
    %v643 = vpop.f32.mrf.mxu0
    %v644 = vadd.f32 %v132, %v643
    %v645 = vpop.f32.mrf.mxu0
    %v646 = vadd.f32 %v136, %v645
    %v647 = vpop.f32.mrf.mxu0
    %v648 = vadd.f32 %v132, %v647
    %v649 = vpop.f32.mrf.mxu0
    %v650 = vadd.f32 %v136, %v649
    %651 = vdwg.mxu0
    %v652 = vpack.c.bf16 %v418, %v414
    %v653 = vpack.c.bf16 %v428, %v424
    %v654 = vpack.c.bf16 %v438, %v434
    %v655 = vpack.c.bf16 %v448, %v444
    %v656 = vpack.c.bf16 %v458, %v454
    %v657 = vpack.c.bf16 %v468, %v464
    %v658 = vpack.c.bf16 %v478, %v474
    %v659 = vpack.c.bf16 %v488, %v484
    %v660 = vpack.c.bf16 %v498, %v494
    %v661 = vpack.c.bf16 %v508, %v504
    %v662 = vpack.c.bf16 %v518, %v514
    %v663 = vpack.c.bf16 %v528, %v524
    %v664 = vpack.c.bf16 %v538, %v534
    %v665 = vpack.c.bf16 %v548, %v544
    %v666 = vpack.c.bf16 %v558, %v554
    %v667 = vpack.c.bf16 %v568, %v564
    %v668 = vpack.c.bf16 %v578, %v574
    %v669 = vpack.c.bf16 %v588, %v584
    %v670 = vpack.c.bf16 %v598, %v594
    %v671 = vpack.c.bf16 %v608, %v604
    %v672 = vpack.c.bf16 %v618, %v614
    %v673 = vpack.c.bf16 %v628, %v624
    %v674 = vpack.c.bf16 %v638, %v634
    %v675 = vpack.c.bf16 %v648, %v644
    %v700 = vunpack.c.l.b16 %v652
    %v701 = vunpack.c.h.b16 %v652
    %v702 = vunpack.c.l.b16 %v653
    %v703 = vunpack.c.h.b16 %v653
    %v704 = vunpack.c.l.b16 %v654
    %v705 = vunpack.c.h.b16 %v654
    %v706 = vunpack.c.l.b16 %v655
    %v707 = vunpack.c.h.b16 %v655
    %v708 = vunpack.c.l.b16 %v656
    %v709 = vunpack.c.h.b16 %v656
    %v710 = vunpack.c.l.b16 %v657
    %v711 = vunpack.c.h.b16 %v657
    %v712 = vunpack.c.l.b16 %v658
    %v713 = vunpack.c.h.b16 %v658
    %v714 = vunpack.c.l.b16 %v659
    %v715 = vunpack.c.h.b16 %v659
    %v716 = vunpack.c.l.b16 %v660
    %v717 = vunpack.c.h.b16 %v660
    %v718 = vunpack.c.l.b16 %v661
    %v719 = vunpack.c.h.b16 %v661
    %v720 = vunpack.c.l.b16 %v662
    %v721 = vunpack.c.h.b16 %v662
    %v722 = vunpack.c.l.b16 %v663
    %v723 = vunpack.c.h.b16 %v663
    %v724 = vunpack.c.l.b16 %v664
    %v725 = vunpack.c.h.b16 %v664
    %v726 = vunpack.c.l.b16 %v665
    %v727 = vunpack.c.h.b16 %v665
    %v728 = vunpack.c.l.b16 %v666
    %v729 = vunpack.c.h.b16 %v666
    %v730 = vunpack.c.l.b16 %v667
    %v731 = vunpack.c.h.b16 %v667
    %v732 = vunpack.c.l.b16 %v668
    %v733 = vunpack.c.h.b16 %v668
    %v734 = vunpack.c.l.b16 %v669
    %v735 = vunpack.c.h.b16 %v669
    %v736 = vunpack.c.l.b16 %v670
    %v737 = vunpack.c.h.b16 %v670
    %v738 = vunpack.c.l.b16 %v671
    %v739 = vunpack.c.h.b16 %v671
    %v740 = vunpack.c.l.b16 %v672
    %v741 = vunpack.c.h.b16 %v672
    %v742 = vunpack.c.l.b16 %v673
    %v743 = vunpack.c.h.b16 %v673
    %v744 = vunpack.c.l.b16 %v674
    %v745 = vunpack.c.h.b16 %v674
    %v746 = vunpack.c.l.b16 %v675
    %v747 = vunpack.c.h.b16 %v675
    %v748 = vpack.c.b16 %v700, %v700
    %v749 = vpack.c.b16 %v701, %v701
    %v750 = vpack.c.b16 %v702, %v702
    %v751 = vpack.c.b16 %v703, %v703
    %v752 = vpack.c.b16 %v704, %v704
    %v753 = vpack.c.b16 %v705, %v705
    %v754 = vpack.c.b16 %v706, %v706
    %v755 = vpack.c.b16 %v707, %v707
    %v756 = vpack.c.b16 %v708, %v708
    %v757 = vpack.c.b16 %v709, %v709
    %v758 = vpack.c.b16 %v710, %v710
    %v759 = vpack.c.b16 %v711, %v711
    %v760 = vpack.c.b16 %v712, %v712
    %v761 = vpack.c.b16 %v713, %v713
    %v762 = vpack.c.b16 %v714, %v714
    %v763 = vpack.c.b16 %v715, %v715
    %v764 = vpack.c.b16 %v716, %v716
    %v765 = vpack.c.b16 %v717, %v717
    %v766 = vpack.c.b16 %v718, %v718
    %v767 = vpack.c.b16 %v719, %v719
    %v768 = vpack.c.b16 %v720, %v720
    %v769 = vpack.c.b16 %v721, %v721
    %v770 = vpack.c.b16 %v722, %v722
    %v771 = vpack.c.b16 %v723, %v723
    %v772 = vpack.c.b16 %v724, %v724
    %v773 = vpack.c.b16 %v725, %v725
    %v774 = vpack.c.b16 %v726, %v726
    %v775 = vpack.c.b16 %v727, %v727
    %v776 = vpack.c.b16 %v728, %v728
    %v777 = vpack.c.b16 %v729, %v729
    %v778 = vpack.c.b16 %v730, %v730
    %v779 = vpack.c.b16 %v731, %v731
    %v780 = vpack.c.b16 %v732, %v732
    %v781 = vpack.c.b16 %v733, %v733
    %v782 = vpack.c.b16 %v734, %v734
    %v783 = vpack.c.b16 %v735, %v735
    %v784 = vpack.c.b16 %v736, %v736
    %v785 = vpack.c.b16 %v737, %v737
    %v786 = vpack.c.b16 %v738, %v738
    %v787 = vpack.c.b16 %v739, %v739
    %v788 = vpack.c.b16 %v740, %v740
    %v789 = vpack.c.b16 %v741, %v741
    %v790 = vpack.c.b16 %v742, %v742
    %v791 = vpack.c.b16 %v743, %v743
    %v792 = vpack.c.b16 %v744, %v744
    %v793 = vpack.c.b16 %v745, %v745
    %v794 = vpack.c.b16 %v746, %v746
    %v795 = vpack.c.b16 %v747, %v747
    %844 = vst [vmem:[#allocation7] sm:$0xf] %v748
    %845 = vst [vmem:[#allocation7 + $0x4] sm:$0xf] %v749
    %846 = vst [vmem:[#allocation7 + $0x8] sm:$0xf] %v750
    %847 = vst [vmem:[#allocation7 + $0xc] sm:$0xf] %v751
    %848 = vst [vmem:[#allocation7 + $0x10] sm:$0xf] %v752
    %849 = vst [vmem:[#allocation7 + $0x14] sm:$0xf] %v753
    %850 = vst [vmem:[#allocation7 + $0x18] sm:$0xf] %v754
    %851 = vst [vmem:[#allocation7 + $0x1c] sm:$0xf] %v755
    %852 = vst [vmem:[#allocation7 + $0x20] sm:$0xf] %v756
    %853 = vst [vmem:[#allocation7 + $0x24] sm:$0xf] %v757
    %854 = vst [vmem:[#allocation7 + $0x28] sm:$0xf] %v758
    %855 = vst [vmem:[#allocation7 + $0x2c] sm:$0xf] %v759
    %856 = vst [vmem:[#allocation7 + $0x30] sm:$0xf] %v760
    %857 = vst [vmem:[#allocation7 + $0x34] sm:$0xf] %v761
    %858 = vst [vmem:[#allocation7 + $0x38] sm:$0xf] %v762
    %859 = vst [vmem:[#allocation7 + $0x3c] sm:$0xf] %v763
    %860 = vst [vmem:[#allocation7 + $0x40] sm:$0xf] %v764
    %861 = vst [vmem:[#allocation7 + $0x44] sm:$0xf] %v765
    %862 = vst [vmem:[#allocation7 + $0x48] sm:$0xf] %v766
    %863 = vst [vmem:[#allocation7 + $0x4c] sm:$0xf] %v767
    %864 = vst [vmem:[#allocation7 + $0x50] sm:$0xf] %v768
    %865 = vst [vmem:[#allocation7 + $0x54] sm:$0xf] %v769
    %866 = vst [vmem:[#allocation7 + $0x58] sm:$0xf] %v770
    %867 = vst [vmem:[#allocation7 + $0x5c] sm:$0xf] %v771
    %868 = vst [vmem:[#allocation7 + $0x60] sm:$0xf] %v772
    %869 = vst [vmem:[#allocation7 + $0x64] sm:$0xf] %v773
    %870 = vst [vmem:[#allocation7 + $0x68] sm:$0xf] %v774
    %871 = vst [vmem:[#allocation7 + $0x6c] sm:$0xf] %v775
    %872 = vst [vmem:[#allocation7 + $0x70] sm:$0xf] %v776
    %873 = vst [vmem:[#allocation7 + $0x74] sm:$0xf] %v777
    %874 = vst [vmem:[#allocation7 + $0x78] sm:$0xf] %v778
    %875 = vst [vmem:[#allocation7 + $0x7c] sm:$0xf] %v779
    %876 = vst [vmem:[#allocation7 + $0x80] sm:$0xf] %v780
    %877 = vst [vmem:[#allocation7 + $0x84] sm:$0xf] %v781
    %878 = vst [vmem:[#allocation7 + $0x88] sm:$0xf] %v782
    %879 = vst [vmem:[#allocation7 + $0x8c] sm:$0xf] %v783
    %880 = vst [vmem:[#allocation7 + $0x90] sm:$0xf] %v784
    %881 = vst [vmem:[#allocation7 + $0x94] sm:$0xf] %v785
    %882 = vst [vmem:[#allocation7 + $0x98] sm:$0xf] %v786
    %883 = vst [vmem:[#allocation7 + $0x9c] sm:$0xf] %v787
    %884 = vst [vmem:[#allocation7 + $0xa0] sm:$0xf] %v788
    %885 = vst [vmem:[#allocation7 + $0xa4] sm:$0xf] %v789
    %886 = vst [vmem:[#allocation7 + $0xa8] sm:$0xf] %v790
    %887 = vst [vmem:[#allocation7 + $0xac] sm:$0xf] %v791
    %888 = vst [vmem:[#allocation7 + $0xb0] sm:$0xf] %v792
    %889 = vst [vmem:[#allocation7 + $0xb4] sm:$0xf] %v793
    %890 = vst [vmem:[#allocation7 + $0xb8] sm:$0xf] %v794
    %891 = vst [vmem:[#allocation7 + $0xbc] sm:$0xf] %v795
    %v892 = vpack.c.bf16 %v420, %v416
    %v893 = vpack.c.bf16 %v430, %v426
    %v894 = vpack.c.bf16 %v440, %v436
    %v895 = vpack.c.bf16 %v450, %v446
    %v896 = vpack.c.bf16 %v460, %v456
    %v897 = vpack.c.bf16 %v470, %v466
    %v898 = vpack.c.bf16 %v480, %v476
    %v899 = vpack.c.bf16 %v490, %v486
    %v900 = vpack.c.bf16 %v500, %v496
    %v901 = vpack.c.bf16 %v510, %v506
    %v902 = vpack.c.bf16 %v520, %v516
    %v903 = vpack.c.bf16 %v530, %v526
    %v904 = vpack.c.bf16 %v540, %v536
    %v905 = vpack.c.bf16 %v550, %v546
    %v906 = vpack.c.bf16 %v560, %v556
    %v907 = vpack.c.bf16 %v570, %v566
    %v908 = vpack.c.bf16 %v580, %v576
    %v909 = vpack.c.bf16 %v590, %v586
    %v910 = vpack.c.bf16 %v600, %v596
    %v911 = vpack.c.bf16 %v610, %v606
    %v912 = vpack.c.bf16 %v620, %v616
    %v913 = vpack.c.bf16 %v630, %v626
    %v914 = vpack.c.bf16 %v640, %v636
    %v915 = vpack.c.bf16 %v650, %v646
    %v940 = vunpack.c.l.b16 %v892
    %v941 = vunpack.c.h.b16 %v892
    %v942 = vunpack.c.l.b16 %v893
    %v943 = vunpack.c.h.b16 %v893
    %v944 = vunpack.c.l.b16 %v894
    %v945 = vunpack.c.h.b16 %v894
    %v946 = vunpack.c.l.b16 %v895
    %v947 = vunpack.c.h.b16 %v895
    %v948 = vunpack.c.l.b16 %v896
    %v949 = vunpack.c.h.b16 %v896
    %v950 = vunpack.c.l.b16 %v897
    %v951 = vunpack.c.h.b16 %v897
    %v952 = vunpack.c.l.b16 %v898
    %v953 = vunpack.c.h.b16 %v898
    %v954 = vunpack.c.l.b16 %v899
    %v955 = vunpack.c.h.b16 %v899
    %v956 = vunpack.c.l.b16 %v900
    %v957 = vunpack.c.h.b16 %v900
    %v958 = vunpack.c.l.b16 %v901
    %v959 = vunpack.c.h.b16 %v901
    %v960 = vunpack.c.l.b16 %v902
    %v961 = vunpack.c.h.b16 %v902
    %v962 = vunpack.c.l.b16 %v903
    %v963 = vunpack.c.h.b16 %v903
    %v964 = vunpack.c.l.b16 %v904
    %v965 = vunpack.c.h.b16 %v904
    %v966 = vunpack.c.l.b16 %v905
    %v967 = vunpack.c.h.b16 %v905
    %v968 = vunpack.c.l.b16 %v906
    %v969 = vunpack.c.h.b16 %v906
    %v970 = vunpack.c.l.b16 %v907
    %v971 = vunpack.c.h.b16 %v907
    %v972 = vunpack.c.l.b16 %v908
    %v973 = vunpack.c.h.b16 %v908
    %v974 = vunpack.c.l.b16 %v909
    %v975 = vunpack.c.h.b16 %v909
    %v976 = vunpack.c.l.b16 %v910
    %v977 = vunpack.c.h.b16 %v910
    %v978 = vunpack.c.l.b16 %v911
    %v979 = vunpack.c.h.b16 %v911
    %v980 = vunpack.c.l.b16 %v912
    %v981 = vunpack.c.h.b16 %v912
    %v982 = vunpack.c.l.b16 %v913
    %v983 = vunpack.c.h.b16 %v913
    %v984 = vunpack.c.l.b16 %v914
    %v985 = vunpack.c.h.b16 %v914
    %v986 = vunpack.c.l.b16 %v915
    %v987 = vunpack.c.h.b16 %v915
    %v988 = vpack.c.b16 %v940, %v940
    %v989 = vpack.c.b16 %v941, %v941
    %v990 = vpack.c.b16 %v942, %v942
    %v991 = vpack.c.b16 %v943, %v943
    %v992 = vpack.c.b16 %v944, %v944
    %v993 = vpack.c.b16 %v945, %v945
    %v994 = vpack.c.b16 %v946, %v946
    %v995 = vpack.c.b16 %v947, %v947
    %v996 = vpack.c.b16 %v948, %v948
    %v997 = vpack.c.b16 %v949, %v949
    %v998 = vpack.c.b16 %v950, %v950
    %v999 = vpack.c.b16 %v951, %v951
    %v1000 = vpack.c.b16 %v952, %v952
    %v1001 = vpack.c.b16 %v953, %v953
    %v1002 = vpack.c.b16 %v954, %v954
    %v1003 = vpack.c.b16 %v955, %v955
    %v1004 = vpack.c.b16 %v956, %v956
    %v1005 = vpack.c.b16 %v957, %v957
    %v1006 = vpack.c.b16 %v958, %v958
    %v1007 = vpack.c.b16 %v959, %v959
    %v1008 = vpack.c.b16 %v960, %v960
    %v1009 = vpack.c.b16 %v961, %v961
    %v1010 = vpack.c.b16 %v962, %v962
    %v1011 = vpack.c.b16 %v963, %v963
    %v1012 = vpack.c.b16 %v964, %v964
    %v1013 = vpack.c.b16 %v965, %v965
    %v1014 = vpack.c.b16 %v966, %v966
    %v1015 = vpack.c.b16 %v967, %v967
    %v1016 = vpack.c.b16 %v968, %v968
    %v1017 = vpack.c.b16 %v969, %v969
    %v1018 = vpack.c.b16 %v970, %v970
    %v1019 = vpack.c.b16 %v971, %v971
    %v1020 = vpack.c.b16 %v972, %v972
    %v1021 = vpack.c.b16 %v973, %v973
    %v1022 = vpack.c.b16 %v974, %v974
    %v1023 = vpack.c.b16 %v975, %v975
    %v1024 = vpack.c.b16 %v976, %v976
    %v1025 = vpack.c.b16 %v977, %v977
    %v1026 = vpack.c.b16 %v978, %v978
    %v1027 = vpack.c.b16 %v979, %v979
    %v1028 = vpack.c.b16 %v980, %v980
    %v1029 = vpack.c.b16 %v981, %v981
    %v1030 = vpack.c.b16 %v982, %v982
    %v1031 = vpack.c.b16 %v983, %v983
    %v1032 = vpack.c.b16 %v984, %v984
    %v1033 = vpack.c.b16 %v985, %v985
    %v1034 = vpack.c.b16 %v986, %v986
    %v1035 = vpack.c.b16 %v987, %v987
    %1084 = vst [vmem:[#allocation8] sm:$0xf] %v988
    %1085 = vst [vmem:[#allocation8 + $0x4] sm:$0xf] %v989
    %1086 = vst [vmem:[#allocation8 + $0x8] sm:$0xf] %v990
    %1087 = vst [vmem:[#allocation8 + $0xc] sm:$0xf] %v991
    %1088 = vst [vmem:[#allocation8 + $0x10] sm:$0xf] %v992
    %1089 = vst [vmem:[#allocation8 + $0x14] sm:$0xf] %v993
    %1090 = vst [vmem:[#allocation8 + $0x18] sm:$0xf] %v994
    %1091 = vst [vmem:[#allocation8 + $0x1c] sm:$0xf] %v995
    %1092 = vst [vmem:[#allocation8 + $0x20] sm:$0xf] %v996
    %1093 = vst [vmem:[#allocation8 + $0x24] sm:$0xf] %v997
    %1094 = vst [vmem:[#allocation8 + $0x28] sm:$0xf] %v998
    %1095 = vst [vmem:[#allocation8 + $0x2c] sm:$0xf] %v999
    %1096 = vst [vmem:[#allocation8 + $0x30] sm:$0xf] %v1000
    %1097 = vst [vmem:[#allocation8 + $0x34] sm:$0xf] %v1001
    %1098 = vst [vmem:[#allocation8 + $0x38] sm:$0xf] %v1002
    %1099 = vst [vmem:[#allocation8 + $0x3c] sm:$0xf] %v1003
    %1100 = vst [vmem:[#allocation8 + $0x40] sm:$0xf] %v1004
    %1101 = vst [vmem:[#allocation8 + $0x44] sm:$0xf] %v1005
    %1102 = vst [vmem:[#allocation8 + $0x48] sm:$0xf] %v1006
    %1103 = vst [vmem:[#allocation8 + $0x4c] sm:$0xf] %v1007
    %1104 = vst [vmem:[#allocation8 + $0x50] sm:$0xf] %v1008
    %1105 = vst [vmem:[#allocation8 + $0x54] sm:$0xf] %v1009
    %1106 = vst [vmem:[#allocation8 + $0x58] sm:$0xf] %v1010
    %1107 = vst [vmem:[#allocation8 + $0x5c] sm:$0xf] %v1011
    %1108 = vst [vmem:[#allocation8 + $0x60] sm:$0xf] %v1012
    %1109 = vst [vmem:[#allocation8 + $0x64] sm:$0xf] %v1013
    %1110 = vst [vmem:[#allocation8 + $0x68] sm:$0xf] %v1014
    %1111 = vst [vmem:[#allocation8 + $0x6c] sm:$0xf] %v1015
    %1112 = vst [vmem:[#allocation8 + $0x70] sm:$0xf] %v1016
    %1113 = vst [vmem:[#allocation8 + $0x74] sm:$0xf] %v1017
    %1114 = vst [vmem:[#allocation8 + $0x78] sm:$0xf] %v1018
    %1115 = vst [vmem:[#allocation8 + $0x7c] sm:$0xf] %v1019
    %1116 = vst [vmem:[#allocation8 + $0x80] sm:$0xf] %v1020
    %1117 = vst [vmem:[#allocation8 + $0x84] sm:$0xf] %v1021
    %1118 = vst [vmem:[#allocation8 + $0x88] sm:$0xf] %v1022
    %1119 = vst [vmem:[#allocation8 + $0x8c] sm:$0xf] %v1023
    %1120 = vst [vmem:[#allocation8 + $0x90] sm:$0xf] %v1024
    %1121 = vst [vmem:[#allocation8 + $0x94] sm:$0xf] %v1025
    %1122 = vst [vmem:[#allocation8 + $0x98] sm:$0xf] %v1026
    %1123 = vst [vmem:[#allocation8 + $0x9c] sm:$0xf] %v1027
    %1124 = vst [vmem:[#allocation8 + $0xa0] sm:$0xf] %v1028
    %1125 = vst [vmem:[#allocation8 + $0xa4] sm:$0xf] %v1029
    %1126 = vst [vmem:[#allocation8 + $0xa8] sm:$0xf] %v1030
    %1127 = vst [vmem:[#allocation8 + $0xac] sm:$0xf] %v1031
    %1128 = vst [vmem:[#allocation8 + $0xb0] sm:$0xf] %v1032
    %1129 = vst [vmem:[#allocation8 + $0xb4] sm:$0xf] %v1033
    %1130 = vst [vmem:[#allocation8 + $0xb8] sm:$0xf] %v1034
    %1131 = vst [vmem:[#allocation8 + $0xbc] sm:$0xf] %v1035
    // Predicated region
    $region22: #{tpu_custom_call.1} parent=1 // pred_check
      _
    $region23: #{tpu_custom_call.1} parent=1 // pred_check_branch
      %1133 = sbr.rel (0) target = $region25
    $region24: #{tpu_custom_call.1} parent=1 // pred_region
      %s1135 = ssub.s32 3072, 3072
      %1136 = vsyncadd [#allocation4], %s1135
      %s1137 = sshll.u32 [#allocation7], 4
      %s1138 = int_to_ptr.vmem [resolvable:$true] %s1137
      %1143 = dma.vmem_to_hbm [thread:$0]  %s1138, 3072, %s3, [#allocation4], 64, 64, 4
    $region25: #{tpu_custom_call.1} parent=1 // pred_fallthru
      _
    // Predicated region
    $region26: #{tpu_custom_call.1} parent=1 // pred_check
      _
    $region27: #{tpu_custom_call.1} parent=1 // pred_check_branch
      %1145 = sbr.rel (0) target = $region29
    $region28: #{tpu_custom_call.1} parent=1 // pred_region
      %s1147 = ssub.s32 3072, 3072
      %1148 = vsyncadd [#allocation9], %s1147
      %s1149 = sshll.u32 [#allocation8], 4
      %s1150 = int_to_ptr.vmem [resolvable:$true] %s1149
      %1155 = dma.vmem_to_hbm [thread:$0]  %s1150, 3072, %s4, [#allocation9], 64, 64, 4
    $region29: #{tpu_custom_call.1} parent=1 // pred_fallthru
      _
    // Predicated region
    $region30: #{tpu_custom_call.1} parent=1 // pred_check
      _
    $region31: #{tpu_custom_call.1} parent=1 // pred_check_branch
      %1157 = sbr.rel (0) target = $region33
    $region32: #{tpu_custom_call.1} parent=1 // pred_region
      %1158 = dma.done [#allocation4], 3072
    $region33: #{tpu_custom_call.1} parent=1 // pred_fallthru
      _
    // Predicated region
    $region34: #{tpu_custom_call.1} parent=1 // pred_check
      _
    $region35: #{tpu_custom_call.1} parent=1 // pred_check_branch
      %1160 = sbr.rel (0) target = $region37
    $region36: #{tpu_custom_call.1} parent=1 // pred_region
      %1161 = dma.done [#allocation9], 3072
    $region37: #{tpu_custom_call.1} parent=1 // pred_fallthru
      _
    %1162 = vsyncpa [#allocation3], 1
    %1163 = vsyncpa [#allocation6], 1
    %1164 = vsyncpa [#allocation4], 1
    %1165 = vsyncpa [#allocation9], 1

// kernel: tpu_custom_call.1
$region0: #{tpu_custom_call.1}
  #allocation0 [shape = 'u32[]', space=smem, size = 0x4, offset = 0x4, fixed_abs, tag = 'smem constant byte address 0x4 - core index']
  #allocation1 [shape = 'u32[144,128]{1,0:T(1,128)}', space=vmem, size = 0x12000, scoped, tag = 'internal scratch']
  %s0 = inlined_call_operand.hbm [shape: bf16[384,128], index: 0, kind: input, shape index: {}]
  %s1 = inlined_call_operand.hbm [shape: bf16[256,128], index: 1, kind: input, shape index: {}]
  %s2 = inlined_call_operand.vmem [shape: f32[1,256], index: 2, kind: input, shape index: {}]
  %s3 = inlined_call_operand.hbm [shape: bf16[384,128], index: 3, kind: output, shape index: {0}]
  %s4 = inlined_call_operand.hbm [shape: bf16[384,128], index: 4, kind: output, shape index: {1}]
  %5 = xla_tuple %s3, %s4
  %s6 = sld [smem:[#allocation0]]
  $region38: #{tpu_custom_call.1} parent=0
    _
  %s8 = ssub.s32 1, %s6
  %s9 = scalar_select 0, %s8, %s6
  $region1: #{tpu_custom_call.1} parent=0
    #allocation2 [shape = 'u8[98304]{0}', space=vmem, size = 0x18000, scoped, tag = 'input window, operand 0, single buffered']
    #allocation3 [shape = 's32[1]{0}', space=sflag, size = 0x4, scoped, tag = 'scoped memory for tpu_custom_call.1']
    #allocation4 [shape = 's32[1]{0}', space=sflag, size = 0x4, scoped, tag = 'scoped memory for tpu_custom_call.1']
    #allocation5 [shape = 'u8[65536]{0}', space=vmem, size = 0x10000, scoped, tag = 'input window, operand 1, single buffered']
    #allocation6 [shape = 's32[1]{0}', space=sflag, size = 0x4, scoped, tag = 'scoped memory for tpu_custom_call.1']
    #allocation7 [shape = 'u8[98304]{0}', space=vmem, size = 0x18000, scoped, tag = 'output window, operand 0, single buffered']
    #allocation8 [shape = 'u8[98304]{0}', space=vmem, size = 0x18000, scoped, tag = 'output window, operand 1, single buffered']
    #allocation9 [shape = 's32[1]{0}', space=sflag, size = 0x4, scoped, tag = 'scoped memory for tpu_custom_call.1']
    %10 = vsyncpa [#allocation3], 0
    %11 = vsyncpa [#allocation6], 0
    %12 = vsyncpa [#allocation4], 0
    %13 = vsyncpa [#allocation9], 0
    // Predicated region
    $region2: #{tpu_custom_call.1} parent=1 // pred_check
      _
    $region3: #{tpu_custom_call.1} parent=1 // pred_check_branch
      %15 = sbr.rel (0) target = $region5
    $region4: #{tpu_custom_call.1} parent=1 // pred_region
      %s17 = ssub.s32 3072, 3072
      %18 = vsyncadd [#allocation3], %s17
      %s19 = sshll.u32 [#allocation2], 4
      %s20 = int_to_ptr.vmem [resolvable:$true] %s19
      %25 = dma.hbm_to_vmem [thread:$0]  %s0, 3072, %s20, [#allocation3], 64, 64, 4
    $region5: #{tpu_custom_call.1} parent=1 // pred_fallthru
      _
    // Predicated region
    $region6: #{tpu_custom_call.1} parent=1 // pred_check
      _
    $region7: #{tpu_custom_call.1} parent=1 // pred_check_branch
      %27 = sbr.rel (0) target = $region9
    $region8: #{tpu_custom_call.1} parent=1 // pred_region
      %s29 = ssub.s32 2048, 2048
      %30 = vsyncadd [#allocation6], %s29
      %s31 = sshll.u32 [#allocation5], 4
      %s32 = int_to_ptr.vmem [resolvable:$true] %s31
      %37 = dma.hbm_to_vmem [thread:$0]  %s1, 2048, %s32, [#allocation6], 64, 64, 4
    $region9: #{tpu_custom_call.1} parent=1 // pred_fallthru
      _
    // Predicated region
    $region10: #{tpu_custom_call.1} parent=1 // pred_check
      _
    $region11: #{tpu_custom_call.1} parent=1 // pred_check_branch
      %39 = sbr.rel (0) target = $region13
    $region12: #{tpu_custom_call.1} parent=1 // pred_region
      _
    $region13: #{tpu_custom_call.1} parent=1 // pred_fallthru
      _
    // Predicated region
    $region14: #{tpu_custom_call.1} parent=1 // pred_check
      _
    $region15: #{tpu_custom_call.1} parent=1 // pred_check_branch
      %41 = sbr.rel (0) target = $region17
    $region16: #{tpu_custom_call.1} parent=1 // pred_region
      %42 = dma.done [#allocation3], 3072
    $region17: #{tpu_custom_call.1} parent=1 // pred_fallthru
      _
    // Predicated region
    $region18: #{tpu_custom_call.1} parent=1 // pred_check
      _
    $region19: #{tpu_custom_call.1} parent=1 // pred_check_branch
      %44 = sbr.rel (0) target = $region21
    $region20: #{tpu_custom_call.1} parent=1 // pred_region
      %45 = dma.done [#allocation6], 2048
    $region21: #{tpu_custom_call.1} parent=1 // pred_fallthru
      _
    %v47 = vld [vmem:[#allocation2] sm:$0xf]
    %v48 = vld [vmem:[#allocation2 + $0x4] sm:$0xf]
    %v49 = vld [vmem:[#allocation2 + $0x8] sm:$0xf]
    %v50 = vld [vmem:[#allocation2 + $0xc] sm:$0xf]
    %v51 = vld [vmem:[#allocation2 + $0x10] sm:$0xf]
    %v52 = vld [vmem:[#allocation2 + $0x14] sm:$0xf]
    %v53 = vld [vmem:[#allocation2 + $0x18] sm:$0xf]
    %v54 = vld [vmem:[#allocation2 + $0x1c] sm:$0xf]
    %v55 = vld [vmem:[#allocation2 + $0x20] sm:$0xf]
    %v56 = vld [vmem:[#allocation2 + $0x24] sm:$0xf]
    %v57 = vld [vmem:[#allocation2 + $0x28] sm:$0xf]
    %v58 = vld [vmem:[#allocation2 + $0x2c] sm:$0xf]
    %v59 = vld [vmem:[#allocation2 + $0x30] sm:$0xf]
    %v60 = vld [vmem:[#allocation2 + $0x34] sm:$0xf]
    %v61 = vld [vmem:[#allocation2 + $0x38] sm:$0xf]
    %v62 = vld [vmem:[#allocation2 + $0x3c] sm:$0xf]
    %v63 = vld [vmem:[#allocation2 + $0x40] sm:$0xf]
    %v64 = vld [vmem:[#allocation2 + $0x44] sm:$0xf]
    %v65 = vld [vmem:[#allocation2 + $0x48] sm:$0xf]
    %v66 = vld [vmem:[#allocation2 + $0x4c] sm:$0xf]
    %v67 = vld [vmem:[#allocation2 + $0x50] sm:$0xf]
    %v68 = vld [vmem:[#allocation2 + $0x54] sm:$0xf]
    %v69 = vld [vmem:[#allocation2 + $0x58] sm:$0xf]
    %v70 = vld [vmem:[#allocation2 + $0x5c] sm:$0xf]
    %v71 = vld [vmem:[#allocation2 + $0x60] sm:$0xf]
    %v72 = vld [vmem:[#allocation2 + $0x64] sm:$0xf]
    %v73 = vld [vmem:[#allocation2 + $0x68] sm:$0xf]
    %v74 = vld [vmem:[#allocation2 + $0x6c] sm:$0xf]
    %v75 = vld [vmem:[#allocation2 + $0x70] sm:$0xf]
    %v76 = vld [vmem:[#allocation2 + $0x74] sm:$0xf]
    %v77 = vld [vmem:[#allocation2 + $0x78] sm:$0xf]
    %v78 = vld [vmem:[#allocation2 + $0x7c] sm:$0xf]
    %v79 = vld [vmem:[#allocation2 + $0x80] sm:$0xf]
    %v80 = vld [vmem:[#allocation2 + $0x84] sm:$0xf]
    %v81 = vld [vmem:[#allocation2 + $0x88] sm:$0xf]
    %v82 = vld [vmem:[#allocation2 + $0x8c] sm:$0xf]
    %v83 = vld [vmem:[#allocation2 + $0x90] sm:$0xf]
    %v84 = vld [vmem:[#allocation2 + $0x94] sm:$0xf]
    %v85 = vld [vmem:[#allocation2 + $0x98] sm:$0xf]
    %v86 = vld [vmem:[#allocation2 + $0x9c] sm:$0xf]
    %v87 = vld [vmem:[#allocation2 + $0xa0] sm:$0xf]
    %v88 = vld [vmem:[#allocation2 + $0xa4] sm:$0xf]
    %v89 = vld [vmem:[#allocation2 + $0xa8] sm:$0xf]
    %v90 = vld [vmem:[#allocation2 + $0xac] sm:$0xf]
    %v91 = vld [vmem:[#allocation2 + $0xb0] sm:$0xf]
    %v92 = vld [vmem:[#allocation2 + $0xb4] sm:$0xf]
    %v93 = vld [vmem:[#allocation2 + $0xb8] sm:$0xf]
    %v94 = vld [vmem:[#allocation2 + $0xbc] sm:$0xf]
    %v95 = vld [vmem:[#allocation5] sm:$0xf]
    %v96 = vld [vmem:[#allocation5 + $0x4] sm:$0xf]
    %v97 = vld [vmem:[#allocation5 + $0x8] sm:$0xf]
    %v98 = vld [vmem:[#allocation5 + $0xc] sm:$0xf]
    %v99 = vld [vmem:[#allocation5 + $0x10] sm:$0xf]
    %v100 = vld [vmem:[#allocation5 + $0x14] sm:$0xf]
    %v101 = vld [vmem:[#allocation5 + $0x18] sm:$0xf]
    %v102 = vld [vmem:[#allocation5 + $0x1c] sm:$0xf]
    %v103 = vld [vmem:[#allocation5 + $0x20] sm:$0xf]
    %v104 = vld [vmem:[#allocation5 + $0x24] sm:$0xf]
    %v105 = vld [vmem:[#allocation5 + $0x28] sm:$0xf]
    %v106 = vld [vmem:[#allocation5 + $0x2c] sm:$0xf]
    %v107 = vld [vmem:[#allocation5 + $0x30] sm:$0xf]
    %v108 = vld [vmem:[#allocation5 + $0x34] sm:$0xf]
    %v109 = vld [vmem:[#allocation5 + $0x38] sm:$0xf]
    %v110 = vld [vmem:[#allocation5 + $0x3c] sm:$0xf]
    %v111 = vld [vmem:[#allocation5 + $0x40] sm:$0xf]
    %v112 = vld [vmem:[#allocation5 + $0x44] sm:$0xf]
    %v113 = vld [vmem:[#allocation5 + $0x48] sm:$0xf]
    %v114 = vld [vmem:[#allocation5 + $0x4c] sm:$0xf]
    %v115 = vld [vmem:[#allocation5 + $0x50] sm:$0xf]
    %v116 = vld [vmem:[#allocation5 + $0x54] sm:$0xf]
    %v117 = vld [vmem:[#allocation5 + $0x58] sm:$0xf]
    %v118 = vld [vmem:[#allocation5 + $0x5c] sm:$0xf]
    %v119 = vld [vmem:[#allocation5 + $0x60] sm:$0xf]
    %v120 = vld [vmem:[#allocation5 + $0x64] sm:$0xf]
    %v121 = vld [vmem:[#allocation5 + $0x68] sm:$0xf]
    %v122 = vld [vmem:[#allocation5 + $0x6c] sm:$0xf]
    %v123 = vld [vmem:[#allocation5 + $0x70] sm:$0xf]
    %v124 = vld [vmem:[#allocation5 + $0x74] sm:$0xf]
    %v125 = vld [vmem:[#allocation5 + $0x78] sm:$0xf]
    %v126 = vld [vmem:[#allocation5 + $0x7c] sm:$0xf]
    %v127 = vld [vmem:[%s2] sm:$0x3]
    %v129 = vlaneseq
    %v130 = vshrl.u32 %v129, 7
    %v131 = vsub.s32 0, %v130
    %v132 = vrot.slane %v127, %v131
    %v133 = vlaneseq
    %v134 = vshrl.u32 %v133, 7
    %v135 = vsub.s32 1, %v134
    %v136 = vrot.slane %v127, %v135
    %v187 = vunpack.c.l.b16 %v47
    %v188 = vunpack.c.l.b16 %v48
    %v189 = vunpack.c.l.b16 %v49
    %v190 = vunpack.c.l.b16 %v50
    %v191 = vunpack.c.l.b16 %v51
    %v192 = vunpack.c.l.b16 %v52
    %v193 = vunpack.c.l.b16 %v53
    %v194 = vunpack.c.l.b16 %v54
    %v195 = vunpack.c.l.b16 %v55
    %v196 = vunpack.c.l.b16 %v56
    %v197 = vunpack.c.l.b16 %v57
    %v198 = vunpack.c.l.b16 %v58
    %v199 = vunpack.c.l.b16 %v59
    %v200 = vunpack.c.l.b16 %v60
    %v201 = vunpack.c.l.b16 %v61
    %v202 = vunpack.c.l.b16 %v62
    %v203 = vunpack.c.l.b16 %v63
    %v204 = vunpack.c.l.b16 %v64
    %v205 = vunpack.c.l.b16 %v65
    %v206 = vunpack.c.l.b16 %v66
    %v207 = vunpack.c.l.b16 %v67
    %v208 = vunpack.c.l.b16 %v68
    %v209 = vunpack.c.l.b16 %v69
    %v210 = vunpack.c.l.b16 %v70
    %v211 = vunpack.c.l.b16 %v71
    %v212 = vunpack.c.l.b16 %v72
    %v213 = vunpack.c.l.b16 %v73
    %v214 = vunpack.c.l.b16 %v74
    %v215 = vunpack.c.l.b16 %v75
    %v216 = vunpack.c.l.b16 %v76
    %v217 = vunpack.c.l.b16 %v77
    %v218 = vunpack.c.l.b16 %v78
    %v219 = vunpack.c.l.b16 %v79
    %v220 = vunpack.c.l.b16 %v80
    %v221 = vunpack.c.l.b16 %v81
    %v222 = vunpack.c.l.b16 %v82
    %v223 = vunpack.c.l.b16 %v83
    %v224 = vunpack.c.l.b16 %v84
    %v225 = vunpack.c.l.b16 %v85
    %v226 = vunpack.c.l.b16 %v86
    %v227 = vunpack.c.l.b16 %v87
    %v228 = vunpack.c.l.b16 %v88
    %v229 = vunpack.c.l.b16 %v89
    %v230 = vunpack.c.l.b16 %v90
    %v231 = vunpack.c.l.b16 %v91
    %v232 = vunpack.c.l.b16 %v92
    %v233 = vunpack.c.l.b16 %v93
    %v234 = vunpack.c.l.b16 %v94
    %v235 = vpack.c.b16 %v188, %v187
    %v236 = vpack.c.b16 %v190, %v189
    %v237 = vpack.c.b16 %v192, %v191
    %v238 = vpack.c.b16 %v194, %v193
    %v239 = vpack.c.b16 %v196, %v195
    %v240 = vpack.c.b16 %v198, %v197
    %v241 = vpack.c.b16 %v200, %v199
    %v242 = vpack.c.b16 %v202, %v201
    %v243 = vpack.c.b16 %v204, %v203
    %v244 = vpack.c.b16 %v206, %v205
    %v245 = vpack.c.b16 %v208, %v207
    %v246 = vpack.c.b16 %v210, %v209
    %v247 = vpack.c.b16 %v212, %v211
    %v248 = vpack.c.b16 %v214, %v213
    %v249 = vpack.c.b16 %v216, %v215
    %v250 = vpack.c.b16 %v218, %v217
    %v251 = vpack.c.b16 %v220, %v219
    %v252 = vpack.c.b16 %v222, %v221
    %v253 = vpack.c.b16 %v224, %v223
    %v254 = vpack.c.b16 %v226, %v225
    %v255 = vpack.c.b16 %v228, %v227
    %v256 = vpack.c.b16 %v230, %v229
    %v257 = vpack.c.b16 %v232, %v231
    %v258 = vpack.c.b16 %v234, %v233
    %v315 = vunpack.c.l.b16 %v95
    %v316 = vunpack.c.l.b16 %v96
    %v317 = vunpack.c.l.b16 %v97
    %v318 = vunpack.c.l.b16 %v98
    %v319 = vunpack.c.l.b16 %v99
    %v320 = vunpack.c.l.b16 %v100
    %v321 = vunpack.c.l.b16 %v101
    %v322 = vunpack.c.l.b16 %v102
    %v323 = vunpack.c.l.b16 %v103
    %v324 = vunpack.c.l.b16 %v104
    %v325 = vunpack.c.l.b16 %v105
    %v326 = vunpack.c.l.b16 %v106
    %v327 = vunpack.c.l.b16 %v107
    %v328 = vunpack.c.l.b16 %v108
    %v329 = vunpack.c.l.b16 %v109
    %v330 = vunpack.c.l.b16 %v110
    %v331 = vunpack.c.l.b16 %v111
    %v332 = vunpack.c.l.b16 %v112
    %v333 = vunpack.c.l.b16 %v113
    %v334 = vunpack.c.l.b16 %v114
    %v335 = vunpack.c.l.b16 %v115
    %v336 = vunpack.c.l.b16 %v116
    %v337 = vunpack.c.l.b16 %v117
    %v338 = vunpack.c.l.b16 %v118
    %v339 = vunpack.c.l.b16 %v119
    %v340 = vunpack.c.l.b16 %v120
    %v341 = vunpack.c.l.b16 %v121
    %v342 = vunpack.c.l.b16 %v122
    %v343 = vunpack.c.l.b16 %v123
    %v344 = vunpack.c.l.b16 %v124
    %v345 = vunpack.c.l.b16 %v125
    %v346 = vunpack.c.l.b16 %v126
    %v347 = vpack.c.b16 %v316, %v315
    %v348 = vpack.c.b16 %v318, %v317
    %v349 = vpack.c.b16 %v320, %v319
    %v350 = vpack.c.b16 %v322, %v321
    %v351 = vpack.c.b16 %v324, %v323
    %v352 = vpack.c.b16 %v326, %v325
    %v353 = vpack.c.b16 %v328, %v327
    %v354 = vpack.c.b16 %v330, %v329
    %v355 = vpack.c.b16 %v332, %v331
    %v356 = vpack.c.b16 %v334, %v333
    %v357 = vpack.c.b16 %v336, %v335
    %v358 = vpack.c.b16 %v338, %v337
    %v359 = vpack.c.b16 %v340, %v339
    %v360 = vpack.c.b16 %v342, %v341
    %v361 = vpack.c.b16 %v344, %v343
    %v362 = vpack.c.b16 %v346, %v345
    %379 = vmatprep.subr.bf16.mxu0 0
    %380 = vmatpush1.bf16.xpose.msra.mxu0 %v354
    %381 = vmatprep.subr.bf16.mxu0 0
    %382 = vmatpush1.bf16.xpose.msra.mxu0 %v353
    %383 = vmatprep.subr.bf16.mxu0 0
    %384 = vmatpush1.bf16.xpose.msra.mxu0 %v352
    %385 = vmatprep.subr.bf16.mxu0 0
    %386 = vmatpush1.bf16.xpose.msra.mxu0 %v351
    %387 = vmatprep.subr.bf16.mxu0 0
    %388 = vmatpush1.bf16.xpose.msra.mxu0 %v350
    %389 = vmatprep.subr.bf16.mxu0 0
    %390 = vmatpush1.bf16.xpose.msra.mxu0 %v349
    %391 = vmatprep.subr.bf16.mxu0 0
    %392 = vmatpush1.bf16.xpose.msra.mxu0 %v348
    %393 = vmatprep.subr.bf16.mxu0 0
    %394 = vmatpush1.bf16.xpose.msra.mxu0 %v347
    %395 = vmatprep.subr.bf16.mxu0 0
    %396 = vmatpush2.bf16.xpose.msra.mxu0 %v362
    %397 = vmatprep.subr.bf16.mxu0 0
    %398 = vmatpush2.bf16.xpose.msra.mxu0 %v361
    %399 = vmatprep.subr.bf16.mxu0 0
    %400 = vmatpush2.bf16.xpose.msra.mxu0 %v360
    %401 = vmatprep.subr.bf16.mxu0 0
    %402 = vmatpush2.bf16.xpose.msra.mxu0 %v359
    %403 = vmatprep.subr.bf16.mxu0 0
    %404 = vmatpush2.bf16.xpose.msra.mxu0 %v358
    %405 = vmatprep.subr.bf16.mxu0 0
    %406 = vmatpush2.bf16.xpose.msra.mxu0 %v357
    %407 = vmatprep.subr.bf16.mxu0 0
    %408 = vmatpush2.bf16.xpose.msra.mxu0 %v356
    %409 = vmatprep.subr.bf16.mxu0 0
    %410 = vmatpush2.bf16.xpose.msra.mxu0 %v355
    %411 = vmatprep.mubr.bf16.mxu0 0
    %412 = vmatmul.mubr.bf16.gmra.mxu0 %v235
    %v413 = vpop.f32.mrf.mxu0
    %v414 = vadd.f32 %v132, %v413
    %v415 = vpop.f32.mrf.mxu0
    %v416 = vadd.f32 %v136, %v415
    %v417 = vpop.f32.mrf.mxu0
    %v418 = vadd.f32 %v132, %v417
    %v419 = vpop.f32.mrf.mxu0
    %v420 = vadd.f32 %v136, %v419
    %421 = vmatprep.mubr.bf16.mxu0 0
    %422 = vmatmul.mubr.bf16.gmra.mxu0 %v236
    %v423 = vpop.f32.mrf.mxu0
    %v424 = vadd.f32 %v132, %v423
    %v425 = vpop.f32.mrf.mxu0
    %v426 = vadd.f32 %v136, %v425
    %v427 = vpop.f32.mrf.mxu0
    %v428 = vadd.f32 %v132, %v427
    %v429 = vpop.f32.mrf.mxu0
    %v430 = vadd.f32 %v136, %v429
    %431 = vmatprep.mubr.bf16.mxu0 0
    %432 = vmatmul.mubr.bf16.gmra.mxu0 %v237
    %v433 = vpop.f32.mrf.mxu0
    %v434 = vadd.f32 %v132, %v433
    %v435 = vpop.f32.mrf.mxu0
    %v436 = vadd.f32 %v136, %v435
    %v437 = vpop.f32.mrf.mxu0
    %v438 = vadd.f32 %v132, %v437
    %v439 = vpop.f32.mrf.mxu0
    %v440 = vadd.f32 %v136, %v439
    %441 = vmatprep.mubr.bf16.mxu0 0
    %442 = vmatmul.mubr.bf16.gmra.mxu0 %v238
    %v443 = vpop.f32.mrf.mxu0
    %v444 = vadd.f32 %v132, %v443
    %v445 = vpop.f32.mrf.mxu0
    %v446 = vadd.f32 %v136, %v445
    %v447 = vpop.f32.mrf.mxu0
    %v448 = vadd.f32 %v132, %v447
    %v449 = vpop.f32.mrf.mxu0
    %v450 = vadd.f32 %v136, %v449
    %451 = vmatprep.mubr.bf16.mxu0 0
    %452 = vmatmul.mubr.bf16.gmra.mxu0 %v239
    %v453 = vpop.f32.mrf.mxu0
    %v454 = vadd.f32 %v132, %v453
    %v455 = vpop.f32.mrf.mxu0
    %v456 = vadd.f32 %v136, %v455
    %v457 = vpop.f32.mrf.mxu0
    %v458 = vadd.f32 %v132, %v457
    %v459 = vpop.f32.mrf.mxu0
    %v460 = vadd.f32 %v136, %v459
    %461 = vmatprep.mubr.bf16.mxu0 0
    %462 = vmatmul.mubr.bf16.gmra.mxu0 %v240
    %v463 = vpop.f32.mrf.mxu0
    %v464 = vadd.f32 %v132, %v463
    %v465 = vpop.f32.mrf.mxu0
    %v466 = vadd.f32 %v136, %v465
    %v467 = vpop.f32.mrf.mxu0
    %v468 = vadd.f32 %v132, %v467
    %v469 = vpop.f32.mrf.mxu0
    %v470 = vadd.f32 %v136, %v469
    %471 = vmatprep.mubr.bf16.mxu0 0
    %472 = vmatmul.mubr.bf16.gmra.mxu0 %v241
    %v473 = vpop.f32.mrf.mxu0
    %v474 = vadd.f32 %v132, %v473
    %v475 = vpop.f32.mrf.mxu0
    %v476 = vadd.f32 %v136, %v475
    %v477 = vpop.f32.mrf.mxu0
    %v478 = vadd.f32 %v132, %v477
    %v479 = vpop.f32.mrf.mxu0
    %v480 = vadd.f32 %v136, %v479
    %481 = vmatprep.mubr.bf16.mxu0 0
    %482 = vmatmul.mubr.bf16.gmra.mxu0 %v242
    %v483 = vpop.f32.mrf.mxu0
    %v484 = vadd.f32 %v132, %v483
    %v485 = vpop.f32.mrf.mxu0
    %v486 = vadd.f32 %v136, %v485
    %v487 = vpop.f32.mrf.mxu0
    %v488 = vadd.f32 %v132, %v487
    %v489 = vpop.f32.mrf.mxu0
    %v490 = vadd.f32 %v136, %v489
    %491 = vmatprep.mubr.bf16.mxu0 0
    %492 = vmatmul.mubr.bf16.gmra.mxu0 %v243
    %v493 = vpop.f32.mrf.mxu0
    %v494 = vadd.f32 %v132, %v493
    %v495 = vpop.f32.mrf.mxu0
    %v496 = vadd.f32 %v136, %v495
    %v497 = vpop.f32.mrf.mxu0
    %v498 = vadd.f32 %v132, %v497
    %v499 = vpop.f32.mrf.mxu0
    %v500 = vadd.f32 %v136, %v499
    %501 = vmatprep.mubr.bf16.mxu0 0
    %502 = vmatmul.mubr.bf16.gmra.mxu0 %v244
    %v503 = vpop.f32.mrf.mxu0
    %v504 = vadd.f32 %v132, %v503
    %v505 = vpop.f32.mrf.mxu0
    %v506 = vadd.f32 %v136, %v505
    %v507 = vpop.f32.mrf.mxu0
    %v508 = vadd.f32 %v132, %v507
    %v509 = vpop.f32.mrf.mxu0
    %v510 = vadd.f32 %v136, %v509
    %511 = vmatprep.mubr.bf16.mxu0 0
    %512 = vmatmul.mubr.bf16.gmra.mxu0 %v245
    %v513 = vpop.f32.mrf.mxu0
    %v514 = vadd.f32 %v132, %v513
    %v515 = vpop.f32.mrf.mxu0
    %v516 = vadd.f32 %v136, %v515
    %v517 = vpop.f32.mrf.mxu0
    %v518 = vadd.f32 %v132, %v517
    %v519 = vpop.f32.mrf.mxu0
    %v520 = vadd.f32 %v136, %v519
    %521 = vmatprep.mubr.bf16.mxu0 0
    %522 = vmatmul.mubr.bf16.gmra.mxu0 %v246
    %v523 = vpop.f32.mrf.mxu0
    %v524 = vadd.f32 %v132, %v523
    %v525 = vpop.f32.mrf.mxu0
    %v526 = vadd.f32 %v136, %v525
    %v527 = vpop.f32.mrf.mxu0
    %v528 = vadd.f32 %v132, %v527
    %v529 = vpop.f32.mrf.mxu0
    %v530 = vadd.f32 %v136, %v529
    %531 = vmatprep.mubr.bf16.mxu0 0
    %532 = vmatmul.mubr.bf16.gmra.mxu0 %v247
    %v533 = vpop.f32.mrf.mxu0
    %v534 = vadd.f32 %v132, %v533
    %v535 = vpop.f32.mrf.mxu0
    %v536 = vadd.f32 %v136, %v535
    %v537 = vpop.f32.mrf.mxu0
    %v538 = vadd.f32 %v132, %v537
    %v539 = vpop.f32.mrf.mxu0
    %v540 = vadd.f32 %v136, %v539
    %541 = vmatprep.mubr.bf16.mxu0 0
    %542 = vmatmul.mubr.bf16.gmra.mxu0 %v248
    %v543 = vpop.f32.mrf.mxu0
    %v544 = vadd.f32 %v132, %v543
    %v545 = vpop.f32.mrf.mxu0
    %v546 = vadd.f32 %v136, %v545
    %v547 = vpop.f32.mrf.mxu0
    %v548 = vadd.f32 %v132, %v547
    %v549 = vpop.f32.mrf.mxu0
    %v550 = vadd.f32 %v136, %v549
    %551 = vmatprep.mubr.bf16.mxu0 0
    %552 = vmatmul.mubr.bf16.gmra.mxu0 %v249
    %v553 = vpop.f32.mrf.mxu0
    %v554 = vadd.f32 %v132, %v553
    %v555 = vpop.f32.mrf.mxu0
    %v556 = vadd.f32 %v136, %v555
    %v557 = vpop.f32.mrf.mxu0
    %v558 = vadd.f32 %v132, %v557
    %v559 = vpop.f32.mrf.mxu0
    %v560 = vadd.f32 %v136, %v559
    %561 = vmatprep.mubr.bf16.mxu0 0
    %562 = vmatmul.mubr.bf16.gmra.mxu0 %v250
    %v563 = vpop.f32.mrf.mxu0
    %v564 = vadd.f32 %v132, %v563
    %v565 = vpop.f32.mrf.mxu0
    %v566 = vadd.f32 %v136, %v565
    %v567 = vpop.f32.mrf.mxu0
    %v568 = vadd.f32 %v132, %v567
    %v569 = vpop.f32.mrf.mxu0
    %v570 = vadd.f32 %v136, %v569
    %571 = vmatprep.mubr.bf16.mxu0 0
    %572 = vmatmul.mubr.bf16.gmra.mxu0 %v251
    %v573 = vpop.f32.mrf.mxu0
    %v574 = vadd.f32 %v132, %v573
    %v575 = vpop.f32.mrf.mxu0
    %v576 = vadd.f32 %v136, %v575
    %v577 = vpop.f32.mrf.mxu0
    %v578 = vadd.f32 %v132, %v577
    %v579 = vpop.f32.mrf.mxu0
    %v580 = vadd.f32 %v136, %v579
    %581 = vmatprep.mubr.bf16.mxu0 0
    %582 = vmatmul.mubr.bf16.gmra.mxu0 %v252
    %v583 = vpop.f32.mrf.mxu0
    %v584 = vadd.f32 %v132, %v583
    %v585 = vpop.f32.mrf.mxu0
    %v586 = vadd.f32 %v136, %v585
    %v587 = vpop.f32.mrf.mxu0
    %v588 = vadd.f32 %v132, %v587
    %v589 = vpop.f32.mrf.mxu0
    %v590 = vadd.f32 %v136, %v589
    %591 = vmatprep.mubr.bf16.mxu0 0
    %592 = vmatmul.mubr.bf16.gmra.mxu0 %v253
    %v593 = vpop.f32.mrf.mxu0
    %v594 = vadd.f32 %v132, %v593
    %v595 = vpop.f32.mrf.mxu0
    %v596 = vadd.f32 %v136, %v595
    %v597 = vpop.f32.mrf.mxu0
    %v598 = vadd.f32 %v132, %v597
    %v599 = vpop.f32.mrf.mxu0
    %v600 = vadd.f32 %v136, %v599
    %601 = vmatprep.mubr.bf16.mxu0 0
    %602 = vmatmul.mubr.bf16.gmra.mxu0 %v254
    %v603 = vpop.f32.mrf.mxu0
    %v604 = vadd.f32 %v132, %v603
    %v605 = vpop.f32.mrf.mxu0
    %v606 = vadd.f32 %v136, %v605
    %v607 = vpop.f32.mrf.mxu0
    %v608 = vadd.f32 %v132, %v607
    %v609 = vpop.f32.mrf.mxu0
    %v610 = vadd.f32 %v136, %v609
    %611 = vmatprep.mubr.bf16.mxu0 0
    %612 = vmatmul.mubr.bf16.gmra.mxu0 %v255
    %v613 = vpop.f32.mrf.mxu0
    %v614 = vadd.f32 %v132, %v613
    %v615 = vpop.f32.mrf.mxu0
    %v616 = vadd.f32 %v136, %v615
    %v617 = vpop.f32.mrf.mxu0
    %v618 = vadd.f32 %v132, %v617
    %v619 = vpop.f32.mrf.mxu0
    %v620 = vadd.f32 %v136, %v619
    %621 = vmatprep.mubr.bf16.mxu0 0
    %622 = vmatmul.mubr.bf16.gmra.mxu0 %v256
    %v623 = vpop.f32.mrf.mxu0
    %v624 = vadd.f32 %v132, %v623
    %v625 = vpop.f32.mrf.mxu0
    %v626 = vadd.f32 %v136, %v625
    %v627 = vpop.f32.mrf.mxu0
    %v628 = vadd.f32 %v132, %v627
    %v629 = vpop.f32.mrf.mxu0
    %v630 = vadd.f32 %v136, %v629
    %631 = vmatprep.mubr.bf16.mxu0 0
    %632 = vmatmul.mubr.bf16.gmra.mxu0 %v257
    %v633 = vpop.f32.mrf.mxu0
    %v634 = vadd.f32 %v132, %v633
    %v635 = vpop.f32.mrf.mxu0
    %v636 = vadd.f32 %v136, %v635
    %v637 = vpop.f32.mrf.mxu0
    %v638 = vadd.f32 %v132, %v637
    %v639 = vpop.f32.mrf.mxu0
    %v640 = vadd.f32 %v136, %v639
    %641 = vmatprep.mubr.bf16.mxu0 0
    %642 = vmatmul.mubr.bf16.gmra.mxu0 %v258
    %v643 = vpop.f32.mrf.mxu0
    %v644 = vadd.f32 %v132, %v643
    %v645 = vpop.f32.mrf.mxu0
    %v646 = vadd.f32 %v136, %v645
    %v647 = vpop.f32.mrf.mxu0
    %v648 = vadd.f32 %v132, %v647
    %v649 = vpop.f32.mrf.mxu0
    %v650 = vadd.f32 %v136, %v649
    %651 = vdwg.mxu0
    %v652 = vpack.c.bf16 %v418, %v414
    %v653 = vpack.c.bf16 %v428, %v424
    %v654 = vpack.c.bf16 %v438, %v434
    %v655 = vpack.c.bf16 %v448, %v444
    %v656 = vpack.c.bf16 %v458, %v454
    %v657 = vpack.c.bf16 %v468, %v464
    %v658 = vpack.c.bf16 %v478, %v474
    %v659 = vpack.c.bf16 %v488, %v484
    %v660 = vpack.c.bf16 %v498, %v494
    %v661 = vpack.c.bf16 %v508, %v504
    %v662 = vpack.c.bf16 %v518, %v514
    %v663 = vpack.c.bf16 %v528, %v524
    %v664 = vpack.c.bf16 %v538, %v534
    %v665 = vpack.c.bf16 %v548, %v544
    %v666 = vpack.c.bf16 %v558, %v554
    %v667 = vpack.c.bf16 %v568, %v564
    %v668 = vpack.c.bf16 %v578, %v574
    %v669 = vpack.c.bf16 %v588, %v584
    %v670 = vpack.c.bf16 %v598, %v594
    %v671 = vpack.c.bf16 %v608, %v604
    %v672 = vpack.c.bf16 %v618, %v614
    %v673 = vpack.c.bf16 %v628, %v624
    %v674 = vpack.c.bf16 %v638, %v634
    %v675 = vpack.c.bf16 %v648, %v644
    %v700 = vunpack.c.l.b16 %v652
    %v701 = vunpack.c.h.b16 %v652
    %v702 = vunpack.c.l.b16 %v653
    %v703 = vunpack.c.h.b16 %v653
    %v704 = vunpack.c.l.b16 %v654
    %v705 = vunpack.c.h.b16 %v654
    %v706 = vunpack.c.l.b16 %v655
    %v707 = vunpack.c.h.b16 %v655
    %v708 = vunpack.c.l.b16 %v656
    %v709 = vunpack.c.h.b16 %v656
    %v710 = vunpack.c.l.b16 %v657
    %v711 = vunpack.c.h.b16 %v657
    %v712 = vunpack.c.l.b16 %v658
    %v713 = vunpack.c.h.b16 %v658
    %v714 = vunpack.c.l.b16 %v659
    %v715 = vunpack.c.h.b16 %v659
    %v716 = vunpack.c.l.b16 %v660
    %v717 = vunpack.c.h.b16 %v660
    %v718 = vunpack.c.l.b16 %v661
    %v719 = vunpack.c.h.b16 %v661
    %v720 = vunpack.c.l.b16 %v662
    %v721 = vunpack.c.h.b16 %v662
    %v722 = vunpack.c.l.b16 %v663
    %v723 = vunpack.c.h.b16 %v663
    %v724 = vunpack.c.l.b16 %v664
    %v725 = vunpack.c.h.b16 %v664
    %v726 = vunpack.c.l.b16 %v665
    %v727 = vunpack.c.h.b16 %v665
    %v728 = vunpack.c.l.b16 %v666
    %v729 = vunpack.c.h.b16 %v666
    %v730 = vunpack.c.l.b16 %v667
    %v731 = vunpack.c.h.b16 %v667
    %v732 = vunpack.c.l.b16 %v668
    %v733 = vunpack.c.h.b16 %v668
    %v734 = vunpack.c.l.b16 %v669
    %v735 = vunpack.c.h.b16 %v669
    %v736 = vunpack.c.l.b16 %v670
    %v737 = vunpack.c.h.b16 %v670
    %v738 = vunpack.c.l.b16 %v671
    %v739 = vunpack.c.h.b16 %v671
    %v740 = vunpack.c.l.b16 %v672
    %v741 = vunpack.c.h.b16 %v672
    %v742 = vunpack.c.l.b16 %v673
    %v743 = vunpack.c.h.b16 %v673
    %v744 = vunpack.c.l.b16 %v674
    %v745 = vunpack.c.h.b16 %v674
    %v746 = vunpack.c.l.b16 %v675
    %v747 = vunpack.c.h.b16 %v675
    %v748 = vpack.c.b16 %v700, %v700
    %v749 = vpack.c.b16 %v701, %v701
    %v750 = vpack.c.b16 %v702, %v702
    %v751 = vpack.c.b16 %v703, %v703
    %v752 = vpack.c.b16 %v704, %v704
    %v753 = vpack.c.b16 %v705, %v705
    %v754 = vpack.c.b16 %v706, %v706
    %v755 = vpack.c.b16 %v707, %v707
    %v756 = vpack.c.b16 %v708, %v708
    %v757 = vpack.c.b16 %v709, %v709
    %v758 = vpack.c.b16 %v710, %v710
    %v759 = vpack.c.b16 %v711, %v711
    %v760 = vpack.c.b16 %v712, %v712
    %v761 = vpack.c.b16 %v713, %v713
    %v762 = vpack.c.b16 %v714, %v714
    %v763 = vpack.c.b16 %v715, %v715
    %v764 = vpack.c.b16 %v716, %v716
    %v765 = vpack.c.b16 %v717, %v717
    %v766 = vpack.c.b16 %v718, %v718
    %v767 = vpack.c.b16 %v719, %v719
    %v768 = vpack.c.b16 %v720, %v720
    %v769 = vpack.c.b16 %v721, %v721
    %v770 = vpack.c.b16 %v722, %v722
    %v771 = vpack.c.b16 %v723, %v723
    %v772 = vpack.c.b16 %v724, %v724
    %v773 = vpack.c.b16 %v725, %v725
    %v774 = vpack.c.b16 %v726, %v726
    %v775 = vpack.c.b16 %v727, %v727
    %v776 = vpack.c.b16 %v728, %v728
    %v777 = vpack.c.b16 %v729, %v729
    %v778 = vpack.c.b16 %v730, %v730
    %v779 = vpack.c.b16 %v731, %v731
    %v780 = vpack.c.b16 %v732, %v732
    %v781 = vpack.c.b16 %v733, %v733
    %v782 = vpack.c.b16 %v734, %v734
    %v783 = vpack.c.b16 %v735, %v735
    %v784 = vpack.c.b16 %v736, %v736
    %v785 = vpack.c.b16 %v737, %v737
    %v786 = vpack.c.b16 %v738, %v738
    %v787 = vpack.c.b16 %v739, %v739
    %v788 = vpack.c.b16 %v740, %v740
    %v789 = vpack.c.b16 %v741, %v741
    %v790 = vpack.c.b16 %v742, %v742
    %v791 = vpack.c.b16 %v743, %v743
    %v792 = vpack.c.b16 %v744, %v744
    %v793 = vpack.c.b16 %v745, %v745
    %v794 = vpack.c.b16 %v746, %v746
    %v795 = vpack.c.b16 %v747, %v747
    %844 = vst [vmem:[#allocation7] sm:$0xf] %v748
    %845 = vst [vmem:[#allocation7 + $0x4] sm:$0xf] %v749
    %846 = vst [vmem:[#allocation7 + $0x8] sm:$0xf] %v750
    %847 = vst [vmem:[#allocation7 + $0xc] sm:$0xf] %v751
    %848 = vst [vmem:[#allocation7 + $0x10] sm:$0xf] %v752
    %849 = vst [vmem:[#allocation7 + $0x14] sm:$0xf] %v753
    %850 = vst [vmem:[#allocation7 + $0x18] sm:$0xf] %v754
    %851 = vst [vmem:[#allocation7 + $0x1c] sm:$0xf] %v755
    %852 = vst [vmem:[#allocation7 + $0x20] sm:$0xf] %v756
    %853 = vst [vmem:[#allocation7 + $0x24] sm:$0xf] %v757
    %854 = vst [vmem:[#allocation7 + $0x28] sm:$0xf] %v758
    %855 = vst [vmem:[#allocation7 + $0x2c] sm:$0xf] %v759
    %856 = vst [vmem:[#allocation7 + $0x30] sm:$0xf] %v760
    %857 = vst [vmem:[#allocation7 + $0x34] sm:$0xf] %v761
    %858 = vst [vmem:[#allocation7 + $0x38] sm:$0xf] %v762
    %859 = vst [vmem:[#allocation7 + $0x3c] sm:$0xf] %v763
    %860 = vst [vmem:[#allocation7 + $0x40] sm:$0xf] %v764
    %861 = vst [vmem:[#allocation7 + $0x44] sm:$0xf] %v765
    %862 = vst [vmem:[#allocation7 + $0x48] sm:$0xf] %v766
    %863 = vst [vmem:[#allocation7 + $0x4c] sm:$0xf] %v767
    %864 = vst [vmem:[#allocation7 + $0x50] sm:$0xf] %v768
    %865 = vst [vmem:[#allocation7 + $0x54] sm:$0xf] %v769
    %866 = vst [vmem:[#allocation7 + $0x58] sm:$0xf] %v770
    %867 = vst [vmem:[#allocation7 + $0x5c] sm:$0xf] %v771
    %868 = vst [vmem:[#allocation7 + $0x60] sm:$0xf] %v772
    %869 = vst [vmem:[#allocation7 + $0x64] sm:$0xf] %v773
    %870 = vst [vmem:[#allocation7 + $0x68] sm:$0xf] %v774
    %871 = vst [vmem:[#allocation7 + $0x6c] sm:$0xf] %v775
    %872 = vst [vmem:[#allocation7 + $0x70] sm:$0xf] %v776
    %873 = vst [vmem:[#allocation7 + $0x74] sm:$0xf] %v777
    %874 = vst [vmem:[#allocation7 + $0x78] sm:$0xf] %v778
    %875 = vst [vmem:[#allocation7 + $0x7c] sm:$0xf] %v779
    %876 = vst [vmem:[#allocation7 + $0x80] sm:$0xf] %v780
    %877 = vst [vmem:[#allocation7 + $0x84] sm:$0xf] %v781
    %878 = vst [vmem:[#allocation7 + $0x88] sm:$0xf] %v782
    %879 = vst [vmem:[#allocation7 + $0x8c] sm:$0xf] %v783
    %880 = vst [vmem:[#allocation7 + $0x90] sm:$0xf] %v784
    %881 = vst [vmem:[#allocation7 + $0x94] sm:$0xf] %v785
    %882 = vst [vmem:[#allocation7 + $0x98] sm:$0xf] %v786
    %883 = vst [vmem:[#allocation7 + $0x9c] sm:$0xf] %v787
    %884 = vst [vmem:[#allocation7 + $0xa0] sm:$0xf] %v788
    %885 = vst [vmem:[#allocation7 + $0xa4] sm:$0xf] %v789
    %886 = vst [vmem:[#allocation7 + $0xa8] sm:$0xf] %v790
    %887 = vst [vmem:[#allocation7 + $0xac] sm:$0xf] %v791
    %888 = vst [vmem:[#allocation7 + $0xb0] sm:$0xf] %v792
    %889 = vst [vmem:[#allocation7 + $0xb4] sm:$0xf] %v793
    %890 = vst [vmem:[#allocation7 + $0xb8] sm:$0xf] %v794
    %891 = vst [vmem:[#allocation7 + $0xbc] sm:$0xf] %v795
    %v892 = vpack.c.bf16 %v420, %v416
    %v893 = vpack.c.bf16 %v430, %v426
    %v894 = vpack.c.bf16 %v440, %v436
    %v895 = vpack.c.bf16 %v450, %v446
    %v896 = vpack.c.bf16 %v460, %v456
    %v897 = vpack.c.bf16 %v470, %v466
    %v898 = vpack.c.bf16 %v480, %v476
    %v899 = vpack.c.bf16 %v490, %v486
    %v900 = vpack.c.bf16 %v500, %v496
    %v901 = vpack.c.bf16 %v510, %v506
    %v902 = vpack.c.bf16 %v520, %v516
    %v903 = vpack.c.bf16 %v530, %v526
    %v904 = vpack.c.bf16 %v540, %v536
    %v905 = vpack.c.bf16 %v550, %v546
    %v906 = vpack.c.bf16 %v560, %v556
    %v907 = vpack.c.bf16 %v570, %v566
    %v908 = vpack.c.bf16 %v580, %v576
    %v909 = vpack.c.bf16 %v590, %v586
    %v910 = vpack.c.bf16 %v600, %v596
    %v911 = vpack.c.bf16 %v610, %v606
    %v912 = vpack.c.bf16 %v620, %v616
    %v913 = vpack.c.bf16 %v630, %v626
    %v914 = vpack.c.bf16 %v640, %v636
    %v915 = vpack.c.bf16 %v650, %v646
    %v940 = vunpack.c.l.b16 %v892
    %v941 = vunpack.c.h.b16 %v892
    %v942 = vunpack.c.l.b16 %v893
    %v943 = vunpack.c.h.b16 %v893
    %v944 = vunpack.c.l.b16 %v894
    %v945 = vunpack.c.h.b16 %v894
    %v946 = vunpack.c.l.b16 %v895
    %v947 = vunpack.c.h.b16 %v895
    %v948 = vunpack.c.l.b16 %v896
    %v949 = vunpack.c.h.b16 %v896
    %v950 = vunpack.c.l.b16 %v897
    %v951 = vunpack.c.h.b16 %v897
    %v952 = vunpack.c.l.b16 %v898
    %v953 = vunpack.c.h.b16 %v898
    %v954 = vunpack.c.l.b16 %v899
    %v955 = vunpack.c.h.b16 %v899
    %v956 = vunpack.c.l.b16 %v900
    %v957 = vunpack.c.h.b16 %v900
    %v958 = vunpack.c.l.b16 %v901
    %v959 = vunpack.c.h.b16 %v901
    %v960 = vunpack.c.l.b16 %v902
    %v961 = vunpack.c.h.b16 %v902
    %v962 = vunpack.c.l.b16 %v903
    %v963 = vunpack.c.h.b16 %v903
    %v964 = vunpack.c.l.b16 %v904
    %v965 = vunpack.c.h.b16 %v904
    %v966 = vunpack.c.l.b16 %v905
    %v967 = vunpack.c.h.b16 %v905
    %v968 = vunpack.c.l.b16 %v906
    %v969 = vunpack.c.h.b16 %v906
    %v970 = vunpack.c.l.b16 %v907
    %v971 = vunpack.c.h.b16 %v907
    %v972 = vunpack.c.l.b16 %v908
    %v973 = vunpack.c.h.b16 %v908
    %v974 = vunpack.c.l.b16 %v909
    %v975 = vunpack.c.h.b16 %v909
    %v976 = vunpack.c.l.b16 %v910
    %v977 = vunpack.c.h.b16 %v910
    %v978 = vunpack.c.l.b16 %v911
    %v979 = vunpack.c.h.b16 %v911
    %v980 = vunpack.c.l.b16 %v912
    %v981 = vunpack.c.h.b16 %v912
    %v982 = vunpack.c.l.b16 %v913
    %v983 = vunpack.c.h.b16 %v913
    %v984 = vunpack.c.l.b16 %v914
    %v985 = vunpack.c.h.b16 %v914
    %v986 = vunpack.c.l.b16 %v915
    %v987 = vunpack.c.h.b16 %v915
    %v988 = vpack.c.b16 %v940, %v940
    %v989 = vpack.c.b16 %v941, %v941
    %v990 = vpack.c.b16 %v942, %v942
    %v991 = vpack.c.b16 %v943, %v943
    %v992 = vpack.c.b16 %v944, %v944
    %v993 = vpack.c.b16 %v945, %v945
    %v994 = vpack.c.b16 %v946, %v946
    %v995 = vpack.c.b16 %v947, %v947
    %v996 = vpack.c.b16 %v948, %v948
    %v997 = vpack.c.b16 %v949, %v949
    %v998 = vpack.c.b16 %v950, %v950
    %v999 = vpack.c.b16 %v951, %v951
    %v1000 = vpack.c.b16 %v952, %v952
    %v1001 = vpack.c.b16 %v953, %v953
    %v1002 = vpack.c.b16 %v954, %v954
    %v1003 = vpack.c.b16 %v955, %v955
    %v1004 = vpack.c.b16 %v956, %v956
    %v1005 = vpack.c.b16 %v957, %v957
    %v1006 = vpack.c.b16 %v958, %v958
    %v1007 = vpack.c.b16 %v959, %v959
    %v1008 = vpack.c.b16 %v960, %v960
    %v1009 = vpack.c.b16 %v961, %v961
    %v1010 = vpack.c.b16 %v962, %v962
    %v1011 = vpack.c.b16 %v963, %v963
    %v1012 = vpack.c.b16 %v964, %v964
    %v1013 = vpack.c.b16 %v965, %v965
    %v1014 = vpack.c.b16 %v966, %v966
    %v1015 = vpack.c.b16 %v967, %v967
    %v1016 = vpack.c.b16 %v968, %v968
    %v1017 = vpack.c.b16 %v969, %v969
    %v1018 = vpack.c.b16 %v970, %v970
    %v1019 = vpack.c.b16 %v971, %v971
    %v1020 = vpack.c.b16 %v972, %v972
    %v1021 = vpack.c.b16 %v973, %v973
    %v1022 = vpack.c.b16 %v974, %v974
    %v1023 = vpack.c.b16 %v975, %v975
    %v1024 = vpack.c.b16 %v976, %v976
    %v1025 = vpack.c.b16 %v977, %v977
    %v1026 = vpack.c.b16 %v978, %v978
    %v1027 = vpack.c.b16 %v979, %v979
    %v1028 = vpack.c.b16 %v980, %v980
    %v1029 = vpack.c.b16 %v981, %v981
    %v1030 = vpack.c.b16 %v982, %v982
    %v1031 = vpack.c.b16 %v983, %v983
    %v1032 = vpack.c.b16 %v984, %v984
    %v1033 = vpack.c.b16 %v985, %v985
    %v1034 = vpack.c.b16 %v986, %v986
    %v1035 = vpack.c.b16 %v987, %v987
    %1084 = vst [vmem:[#allocation8] sm:$0xf] %v988
    %1085 = vst [vmem:[#allocation8 + $0x4] sm:$0xf] %v989
    %1086 = vst [vmem:[#allocation8 + $0x8] sm:$0xf] %v990
    %1087 = vst [vmem:[#allocation8 + $0xc] sm:$0xf] %v991
    %1088 = vst [vmem:[#allocation8 + $0x10] sm:$0xf] %v992
    %1089 = vst [vmem:[#allocation8 + $0x14] sm:$0xf] %v993
    %1090 = vst [vmem:[#allocation8 + $0x18] sm:$0xf] %v994
    %1091 = vst [vmem:[#allocation8 + $0x1c] sm:$0xf] %v995
    %1092 = vst [vmem:[#allocation8 + $0x20] sm:$0xf] %v996
    %1093 = vst [vmem:[#allocation8 + $0x24] sm:$0xf] %v997
    %1094 = vst [vmem:[#allocation8 + $0x28] sm:$0xf] %v998
    %1095 = vst [vmem:[#allocation8 + $0x2c] sm:$0xf] %v999
    %1096 = vst [vmem:[#allocation8 + $0x30] sm:$0xf] %v1000
    %1097 = vst [vmem:[#allocation8 + $0x34] sm:$0xf] %v1001
    %1098 = vst [vmem:[#allocation8 + $0x38] sm:$0xf] %v1002
    %1099 = vst [vmem:[#allocation8 + $0x3c] sm:$0xf] %v1003
    %1100 = vst [vmem:[#allocation8 + $0x40] sm:$0xf] %v1004
    %1101 = vst [vmem:[#allocation8 + $0x44] sm:$0xf] %v1005
    %1102 = vst [vmem:[#allocation8 + $0x48] sm:$0xf] %v1006
    %1103 = vst [vmem:[#allocation8 + $0x4c] sm:$0xf] %v1007
    %1104 = vst [vmem:[#allocation8 + $0x50] sm:$0xf] %v1008
    %1105 = vst [vmem:[#allocation8 + $0x54] sm:$0xf] %v1009
    %1106 = vst [vmem:[#allocation8 + $0x58] sm:$0xf] %v1010
    %1107 = vst [vmem:[#allocation8 + $0x5c] sm:$0xf] %v1011
    %1108 = vst [vmem:[#allocation8 + $0x60] sm:$0xf] %v1012
    %1109 = vst [vmem:[#allocation8 + $0x64] sm:$0xf] %v1013
    %1110 = vst [vmem:[#allocation8 + $0x68] sm:$0xf] %v1014
    %1111 = vst [vmem:[#allocation8 + $0x6c] sm:$0xf] %v1015
    %1112 = vst [vmem:[#allocation8 + $0x70] sm:$0xf] %v1016
    %1113 = vst [vmem:[#allocation8 + $0x74] sm:$0xf] %v1017
    %1114 = vst [vmem:[#allocation8 + $0x78] sm:$0xf] %v1018
    %1115 = vst [vmem:[#allocation8 + $0x7c] sm:$0xf] %v1019
    %1116 = vst [vmem:[#allocation8 + $0x80] sm:$0xf] %v1020
    %1117 = vst [vmem:[#allocation8 + $0x84] sm:$0xf] %v1021
    %1118 = vst [vmem:[#allocation8 + $0x88] sm:$0xf] %v1022
    %1119 = vst [vmem:[#allocation8 + $0x8c] sm:$0xf] %v1023
    %1120 = vst [vmem:[#allocation8 + $0x90] sm:$0xf] %v1024
    %1121 = vst [vmem:[#allocation8 + $0x94] sm:$0xf] %v1025
    %1122 = vst [vmem:[#allocation8 + $0x98] sm:$0xf] %v1026
    %1123 = vst [vmem:[#allocation8 + $0x9c] sm:$0xf] %v1027
    %1124 = vst [vmem:[#allocation8 + $0xa0] sm:$0xf] %v1028
    %1125 = vst [vmem:[#allocation8 + $0xa4] sm:$0xf] %v1029
    %1126 = vst [vmem:[#allocation8 + $0xa8] sm:$0xf] %v1030
    %1127 = vst [vmem:[#allocation8 + $0xac] sm:$0xf] %v1031
    %1128 = vst [vmem:[#allocation8 + $0xb0] sm:$0xf] %v1032
    %1129 = vst [vmem:[#allocation8 + $0xb4] sm:$0xf] %v1033
    %1130 = vst [vmem:[#allocation8 + $0xb8] sm:$0xf] %v1034
    %1131 = vst [vmem:[#allocation8 + $0xbc] sm:$0xf] %v1035
    // Predicated region
    $region22: #{tpu_custom_call.1} parent=1 // pred_check
      _
    $region23: #{tpu_custom_call.1} parent=1 // pred_check_branch
      %1133 = sbr.rel (0) target = $region25
    $region24: #{tpu_custom_call.1} parent=1 // pred_region
      %s1135 = ssub.s32 3072, 3072
      %1136 = vsyncadd [#allocation4], %s1135
      %s1137 = sshll.u32 [#allocation7], 4
      %s1138 = int_to_ptr.vmem [resolvable:$true] %s1137
      %1143 = dma.vmem_to_hbm [thread:$0]  %s1138, 3072, %s3, [#allocation4], 64, 64, 4
    $region25: #{tpu_custom_call.1} parent=1 // pred_fallthru
      _
    // Predicated region
    $region26: #{tpu_custom_call.1} parent=1 // pred_check
      _
    $region27: #{tpu_custom_call.1} parent=1 // pred_check_branch
      %1145 = sbr.rel (0) target = $region29
    $region28: #{tpu_custom_call.1} parent=1 // pred_region
      %s1147 = ssub.s32 3072, 3072
      %1148 = vsyncadd [#allocation9], %s1147
      %s1149 = sshll.u32 [#allocation8], 4
      %s1150 = int_to_ptr.vmem [resolvable:$true] %s1149
      %1155 = dma.vmem_to_hbm [thread:$0]  %s1150, 3072, %s4, [#allocation9], 64, 64, 4
    $region29: #{tpu_custom_call.1} parent=1 // pred_fallthru
      _
    // Predicated region
    $region30: #{tpu_custom_call.1} parent=1 // pred_check
      _
    $region31: #{tpu_custom_call.1} parent=1 // pred_check_branch
      %1157 = sbr.rel (0) target = $region33
    $region32: #{tpu_custom_call.1} parent=1 // pred_region
      %1158 = dma.done [#allocation4], 3072
    $region33: #{tpu_custom_call.1} parent=1 // pred_fallthru
      _
    // Predicated region
    $region34: #{tpu_custom_call.1} parent=1 // pred_check
      _
    $region35: #{tpu_custom_call.1} parent=1 // pred_check_branch
      %1160 = sbr.rel (0) target = $region37
    $region36: #{tpu_custom_call.1} parent=1 // pred_region
      %1161 = dma.done [#allocation9], 3072
    $region37: #{tpu_custom_call.1} parent=1 // pred_fallthru
      _
    %1162 = vsyncpa [#allocation3], 1
    %1163 = vsyncpa [#allocation6], 1
    %1164 = vsyncpa [#allocation4], 1
    %1165 = vsyncpa [#allocation9], 1

</llo_original>
